<compile_context>
chip_gen: v5e
topology: v5e:2x2
jax: 0.10.0
libtpu: 0.0.40
codegen_flags: <defaults>
</compile_context>

<pallas_src>
import functools
import math

import jax
import jax.numpy as jnp
from jax.experimental import pallas as pl
from jax.experimental.pallas import tpu as pltpu

_LN_EPS = 1e-5  # torch.nn.LayerNorm default


def _round_up(x, m):
    return (x + m - 1) // m * m


def _gelu_exact(x):
    # torch.nn.GELU() default: exact erf formulation, computed in f32.
    return 0.5 * x * (1.0 + jax.lax.erf(x * 0.7071067811865476))


def _layer_norm_f32(x, gamma, beta):
    mu = jnp.mean(x, axis=-1, keepdims=True)
    xc = x - mu
    var = jnp.mean(xc * xc, axis=-1, keepdims=True)
    return xc * jax.lax.rsqrt(var + _LN_EPS) * gamma + beta


# --------------------------------------------------------------------------
# Kernel 1:  x2 = LN2( LN1(e) + MultiHeadAttention(e, e, e) )
# grid = (batch [parallel], head [arbitrary, accumulated])
# --------------------------------------------------------------------------
def _attn_block_kernel(e_ref, wq_ref, wv_ref, wo_ref, bo_ref,
                       g1_ref, be1_ref, g2_ref, be2_ref, o_ref, acc_ref):
    # e_ref:   (1, S, H)   one batch element of the embeddings
    # wq_ref:  (1, H, d)   this head's query projection (also used for K)
    # wv_ref:  (1, H, d)   this head's value projection
    # wo_ref:  (d, H)      output-projection rows for this head ([in, out])
    # bo_ref, g*/be*: (1, H)
    # o_ref:   (1, S, H)
    # acc_ref: VMEM (S, H) f32 accumulator across the head grid axis
    h = pl.program_id(1)
    d = wq_ref.shape[2]
    scale = 1.0 / math.sqrt(d)

    @pl.when(h == 0)
    def _():
        acc_ref[...] = jnp.zeros_like(acc_ref)

    e = e_ref[0]                                                     # (S, H), native dtype
    # Reference bug: K is projected with the *query* weights and Q==K==V==e,
    # so k == q; compute once and reuse.
    q = jnp.dot(e, wq_ref[0], preferred_element_type=jnp.float32)    # (S, d)
    v = jnp.dot(e, wv_ref[0], preferred_element_type=jnp.float32)    # (S, d)
    scores = jax.lax.dot_general(                                    # (S, S) f32
        q * scale, q, (((1,), (1,)), ((), ())),
        preferred_element_type=jnp.float32)
    m = jnp.max(scores, axis=-1, keepdims=True)
    p = jnp.exp(scores - m)
    w = p / jnp.sum(p, axis=-1, keepdims=True)
    ctx = jnp.dot(w, v, preferred_element_type=jnp.float32)          # (S, d)
    # concat([ctx_h], -1) @ Wo  ==  sum_h ctx_h @ Wo[h*d:(h+1)*d, :]
    acc_ref[...] += jnp.dot(ctx.astype(wo_ref.dtype), wo_ref[...],
                            preferred_element_type=jnp.float32)      # (S, H)

    @pl.when(h == pl.num_programs(1) - 1)
    def _():
        attn = acc_ref[...] + bo_ref[...].astype(jnp.float32)
        ef = e.astype(jnp.float32)
        x = _layer_norm_f32(ef, g1_ref[...].astype(jnp.float32),
                            be1_ref[...].astype(jnp.float32)) + attn
        x2 = _layer_norm_f32(x, g2_ref[...].astype(jnp.float32),
                             be2_ref[...].astype(jnp.float32))
        o_ref[0] = x2.astype(o_ref.dtype)


# --------------------------------------------------------------------------
# Kernel 2:  out = x + Linear2(GELU(Linear1(x)))   (dropout = identity)
# grid = (row tiles [parallel], ff tiles [arbitrary, accumulated])
# --------------------------------------------------------------------------
def _ffn_block_kernel(x_ref, w1_ref, b1_ref, w2_ref, b2_ref, o_ref, acc_ref):
    # x_ref:  (tm, H)   row tile of LN2 output (also the residual source)
    # w1_ref: (H, tf)   linear_1 weight column slice [in, out-chunk]
    # b1_ref: (1, tf)
    # w2_ref: (tf, H)   linear_2 weight row slice [in-chunk, out]
    # b2_ref: (1, H)
    # o_ref:  (tm, H)
    # acc_ref: VMEM (tm, H) f32 accumulator across the ff grid axis
    f = pl.program_id(1)

    @pl.when(f == 0)
    def _():
        acc_ref[...] = jnp.zeros_like(acc_ref)

    x = x_ref[...]                                                   # native dtype
    hmid = jnp.dot(x, w1_ref[...], preferred_element_type=jnp.float32)
    hmid = _gelu_exact(hmid + b1_ref[...].astype(jnp.float32))       # f32 epilogue
    acc_ref[...] += jnp.dot(hmid.astype(x.dtype), w2_ref[...],
                            preferred_element_type=jnp.float32)

    @pl.when(f == pl.num_programs(1) - 1)
    def _():
        y = acc_ref[...] + b2_ref[...].astype(jnp.float32)
        # Dropout() is eval-mode identity; fuse the residual add.
        o_ref[...] = (x.astype(jnp.float32) + y).astype(o_ref.dtype)


def _choose_tf(F):
    """Pick an ff-dim tile: full F when small, else a 128-multiple divisor."""
    if F <= 4096:
        return F
    for cand in (4096, 2048, 1024, 512, 256, 128):
        if F % cand == 0:
            return cand
    return F  # fall back to untiled (correct, possibly VMEM-heavy)


@functools.partial(jax.jit, static_argnames=("tm", "tf"))
def transformer_decoder_block(e, params, *, tm=256, tf=None):
    """e: [B, S, H] -> [B, S, H], matching the PyTorch TransformerDecoderBlock."""
    B, S, H = e.shape
    n_heads, _, d = params["wq"].shape
    F = params["w1"].shape[1]
    itemsize = e.dtype.itemsize
    row2d = lambda a: a.reshape(1, -1)
    # Wo row-block of size d must satisfy the (8,128) rule unless it spans H.
    assert (d % 8 == 0) or (n_heads == 1), "head_dim must be a multiple of 8"

    # ---- kernel 1: x2 = LN2(LN1(e) + MHA(e)), grid over (batch, head) -----
    attn_cost = pl.CostEstimate(
        flops=int(B * (6 * S * H * H + 4 * S * S * H)),
        transcendentals=int(B * n_heads * S * S),
        bytes_accessed=int(2 * B * S * H * itemsize
                           + (3 * H * H + 5 * H) * itemsize),
    )
    x2 = pl.pallas_call(
        _attn_block_kernel,
        out_shape=jax.ShapeDtypeStruct((B, S, H), e.dtype),
        grid_spec=pltpu.PrefetchScalarGridSpec(
            num_scalar_prefetch=0,
            grid=(B, n_heads),
            in_specs=[
                pl.BlockSpec((1, S, H), lambda b, h: (b, 0, 0)),       # embeddings
                pl.BlockSpec((1, H, d), lambda b, h: (h, 0, 0)),       # Wq head (=Wk)
                pl.BlockSpec((1, H, d), lambda b, h: (h, 0, 0)),       # Wv head
                pl.BlockSpec((d, H), lambda b, h: (h, 0)),             # Wo row slice
                pl.BlockSpec((1, H), lambda b, h: (0, 0)),             # bo
                pl.BlockSpec((1, H), lambda b, h: (0, 0)),             # ln1 gamma
                pl.BlockSpec((1, H), lambda b, h: (0, 0)),             # ln1 beta
                pl.BlockSpec((1, H), lambda b, h: (0, 0)),             # ln2 gamma
                pl.BlockSpec((1, H), lambda b, h: (0, 0)),             # ln2 beta
            ],
            out_specs=pl.BlockSpec((1, S, H), lambda b, h: (b, 0, 0)),
            scratch_shapes=[pltpu.VMEM((S, H), jnp.float32)],
        ),
        compiler_params=pltpu.CompilerParams(
            dimension_semantics=("parallel", "arbitrary")),
        cost_estimate=attn_cost,
    )(e, params["wq"], params["wv"], params["wo"], row2d(params["bo"]),
      row2d(params["ln1_g"]), row2d(params["ln1_b"]),
      row2d(params["ln2_g"]), row2d(params["ln2_b"]))

    # ---- kernel 2: out = x2 + FFN(x2), grid over (row tiles, ff tiles) ----
    M = B * S
    x2_flat = x2.reshape(M, H)
    tm_eff = max(8, min(_round_up(tm, 8), _round_up(M, 8)))
    tf_eff = _choose_tf(F) if tf is None else tf
    grid = (pl.cdiv(M, tm_eff), pl.cdiv(F, tf_eff))

    ffn_cost = pl.CostEstimate(
        flops=int(4 * M * H * F),
        transcendentals=int(M * F),
        bytes_accessed=int((2 * M * H + 2 * H * F + F + H) * itemsize),
    )
    out = pl.pallas_call(
        _ffn_block_kernel,
        out_shape=jax.ShapeDtypeStruct((M, H), e.dtype),
        grid_spec=pltpu.PrefetchScalarGridSpec(
            num_scalar_prefetch=0,
            grid=grid,
            in_specs=[
                pl.BlockSpec((tm_eff, H), lambda i, f: (i, 0)),    # x row tile
                pl.BlockSpec((H, tf_eff), lambda i, f: (0, f)),    # W1 col slice
                pl.BlockSpec((1, tf_eff), lambda i, f: (0, f)),    # b1 slice
                pl.BlockSpec((tf_eff, H), lambda i, f: (f, 0)),    # W2 row slice
                pl.BlockSpec((1, H), lambda i, f: (0, 0)),         # b2
            ],
            out_specs=pl.BlockSpec((tm_eff, H), lambda i, f: (i, 0)),
            scratch_shapes=[pltpu.VMEM((tm_eff, H), jnp.float32)],
        ),
        compiler_params=pltpu.CompilerParams(
            dimension_semantics=("parallel", "arbitrary"),
            vmem_limit_bytes=64 * 1024 * 1024),
        cost_estimate=ffn_cost,
    )(x2_flat, params["w1"], row2d(params["b1"]),
      params["w2"], row2d(params["b2"]))

    return out.reshape(B, S, H)


# --------------------------------------------------------------------------
# Parameters (stored [in, out], i.e. transposed relative to torch's [out, in])
# and a pure-JAX reference of the PyTorch forward pass.
# --------------------------------------------------------------------------
def init_params(key, hidden_size, n_heads, ff_hidden_size, dtype=jnp.float32):
    head_dim = hidden_size // n_heads
    assert head_dim * n_heads == hidden_size
    ks = jax.random.split(key, 12)
    bq = 1.0 / math.sqrt(hidden_size)
    bf = 1.0 / math.sqrt(ff_hidden_size)
    u = lambda k, shape, b: jax.random.uniform(k, shape, dtype, minval=-b, maxval=b)
    # TODO(synk): for production, pad hidden/ff dims to multiples of 128 at
    # parameter-preparation time for lane-dense layouts.
    return {
        # Per-head projections [head, in, out]; the reference module's key
        # projection is unused (K is projected with the query weights).
        "wq": u(ks[0], (n_heads, hidden_size, head_dim), bq),
        "wv": u(ks[1], (n_heads, hidden_size, head_dim), bq),
        "wo": u(ks[2], (hidden_size, hidden_size), bq),
        "bo": u(ks[3], (hidden_size,), bq),
        "ln1_g": 1.0 + 0.1 * jax.random.normal(ks[4], (hidden_size,), dtype),
        "ln1_b": 0.1 * jax.random.normal(ks[5], (hidden_size,), dtype),
        "ln2_g": 1.0 + 0.1 * jax.random.normal(ks[6], (hidden_size,), dtype),
        "ln2_b": 0.1 * jax.random.normal(ks[7], (hidden_size,), dtype),
        "w1": u(ks[8], (hidden_size, ff_hidden_size), bq),
        "b1": u(ks[9], (ff_hidden_size,), bq),
        "w2": u(ks[10], (ff_hidden_size, hidden_size), bf),
        "b2": u(ks[11], (hidden_size,), bf),
    }


def reference_decoder_block(e, params):
    def ln(x, g, b):
        mu = x.mean(-1, keepdims=True)
        var = ((x - mu) ** 2).mean(-1, keepdims=True)
        return (x - mu) / jnp.sqrt(var + _LN_EPS) * g + b

    n_heads, _, d = params["wq"].shape
    heads = []
    for h in range(n_heads):
        q = e @ params["wq"][h]
        k = e @ params["wq"][h]     # reference bug: K projected with query weights
        v = e @ params["wv"][h]
        s = jnp.einsum("bqd,bkd->bqk", q, k) / math.sqrt(d)
        w = jax.nn.softmax(s, axis=-1)
        heads.append(jnp.einsum("bqk,bkd->bqd", w, v))
    attn = jnp.concatenate(heads, axis=-1) @ params["wo"] + params["bo"]
    x = ln(e, params["ln1_g"], params["ln1_b"]) + attn
    x = ln(x, params["ln2_g"], params["ln2_b"])
    ff = (jax.nn.gelu(x @ params["w1"] + params["b1"], approximate=False)
          @ params["w2"] + params["b2"])
    return x + ff


if __name__ == "__main__":
    batch, seq, hidden, n_heads, ff_hidden = 2, 16, 128, 4, 256

    key = jax.random.PRNGKey(0)
    kx, kp = jax.random.split(key)
    x = jax.random.normal(kx, (batch, seq, hidden), dtype=jnp.float32)
    params = init_params(kp, hidden, n_heads, ff_hidden)

    out = transformer_decoder_block(x, params, tm=256)
    out = jax.block_until_ready(out)

    with jax.default_matmul_precision("highest"):
        ref = reference_decoder_block(x, params)

    assert out.shape == (batch, seq, hidden)
    assert jnp.allclose(out, ref, atol=1e-3, rtol=1e-3), (
        f"mismatch vs reference: max abs err {jnp.max(jnp.abs(out - ref)):.3e}")
    print("KERNEL_OK")
</pallas_src>

<mosaic_0001>
module attributes {stable_mosaic.version = 11 : i64} {
  func.func @_ffn_block_kernel(%arg0: i32, %arg1: i32, %arg2: memref<32x128xf32, #tpu.memory_space<vmem>>, %arg3: memref<128x256xf32, #tpu.memory_space<vmem>>, %arg4: memref<1x256xf32, #tpu.memory_space<vmem>>, %arg5: memref<256x128xf32, #tpu.memory_space<vmem>>, %arg6: memref<1x128xf32, #tpu.memory_space<vmem>>, %arg7: memref<32x128xf32, #tpu.memory_space<vmem>>, %arg8: memref<32x128xf32, #tpu.memory_space<vmem>>) attributes {dimension_semantics = [#tpu.dimension_semantics<parallel>, #tpu.dimension_semantics<arbitrary>], iteration_bounds = array<i64: 1, 1>, scalar_prefetch = 0 : i64, scratch_operands = 1 : i64, tpu.core_type = #tpu.core_type<tc>, window_params = [{transform_indices = @transform_0, window_bounds = array<i64: 32, 128>}, {transform_indices = @transform_1, window_bounds = array<i64: 128, 256>}, {transform_indices = @transform_2, window_bounds = array<i64: 1, 256>}, {transform_indices = @transform_3, window_bounds = array<i64: 256, 128>}, {pipeline_mode = #tpu.pipeline_mode<synchronous>, transform_indices = @transform_4, window_bounds = array<i64: 1, 128>}, {transform_indices = @transform_5, window_bounds = array<i64: 32, 128>}]} {
    %c0_i32 = arith.constant 0 : i32
    %0 = arith.cmpi eq, %arg1, %c0_i32 : i32
    %1 = arith.extui %0 : i1 to i32
    %c0_i32_0 = arith.constant 0 : i32
    %2 = arith.cmpi ne, %1, %c0_i32_0 : i32
    scf.if %2 {
      %cst_18 = arith.constant 0.000000e+00 : f32
      %25 = vector.broadcast %cst_18 : f32 to vector<32x128xf32>
      %c0_19 = arith.constant 0 : index
      %c0_20 = arith.constant 0 : index
      %26 = vector.load %arg8[%c0_19, %c0_20] : memref<32x128xf32, #tpu.memory_space<vmem>>, vector<32x128xf32>
      tpu.vector_store %arg8[%c0_19, %c0_20], %25 {strides = array<i32>} : memref<32x128xf32, #tpu.memory_space<vmem>>, vector<32x128xf32>,
    } else {
    }
    %c0 = arith.constant 0 : index
    %c0_1 = arith.constant 0 : index
    %3 = vector.load %arg2[%c0, %c0_1] : memref<32x128xf32, #tpu.memory_space<vmem>>, vector<32x128xf32>
    %c0_2 = arith.constant 0 : index
    %c0_3 = arith.constant 0 : index
    %4 = vector.load %arg3[%c0_2, %c0_3] : memref<128x256xf32, #tpu.memory_space<vmem>>, vector<128x256xf32>
    %cst = arith.constant dense<0.000000e+00> : vector<32x256xf32>
    %5 = tpu.matmul %3, %4, %cst {dimension_numbers = #tpu.dot_dimension_numbers<[1], [0], [0], [1], [0, 0, 1, 1], [], []>} : vector<32x128xf32>, vector<128x256xf32>, vector<32x256xf32> -> vector<32x256xf32>
    %c0_4 = arith.constant 0 : index
    %c0_5 = arith.constant 0 : index
    %6 = vector.load %arg4[%c0_4, %c0_5] : memref<1x256xf32, #tpu.memory_space<vmem>>, vector<1x256xf32>
    %7 = vector.broadcast %6 : vector<1x256xf32> to vector<32x256xf32>
    %8 = arith.addf %5, %7 : vector<32x256xf32>
    %cst_6 = arith.constant 5.000000e-01 : f32
    %9 = vector.broadcast %cst_6 : f32 to vector<32x256xf32>
    %10 = arith.mulf %9, %8 : vector<32x256xf32>
    %cst_7 = arith.constant 0.707106769 : f32
    %11 = vector.broadcast %cst_7 : f32 to vector<32x256xf32>
    %12 = arith.mulf %8, %11 : vector<32x256xf32>
    %13 = math.erf %12 : vector<32x256xf32>
    %cst_8 = arith.constant 1.000000e+00 : f32
    %14 = vector.broadcast %cst_8 : f32 to vector<32x256xf32>
    %15 = arith.addf %14, %13 : vector<32x256xf32>
    %16 = arith.mulf %10, %15 : vector<32x256xf32>
    %c0_9 = arith.constant 0 : index
    %c0_10 = arith.constant 0 : index
    %17 = vector.load %arg8[%c0_9, %c0_10] : memref<32x128xf32, #tpu.memory_space<vmem>>, vector<32x128xf32>
    %c0_11 = arith.constant 0 : index
    %c0_12 = arith.constant 0 : index
    %18 = vector.load %arg5[%c0_11, %c0_12] : memref<256x128xf32, #tpu.memory_space<vmem>>, vector<256x128xf32>
    %cst_13 = arith.constant dense<0.000000e+00> : vector<32x128xf32>
    %19 = tpu.matmul %16, %18, %cst_13 {dimension_numbers = #tpu.dot_dimension_numbers<[1], [0], [0], [1], [0, 0, 1, 1], [], []>} : vector<32x256xf32>, vector<256x128xf32>, vector<32x128xf32> -> vector<32x128xf32>
    %20 = arith.addf %17, %19 : vector<32x128xf32>
    %c0_14 = arith.constant 0 : index
    %c0_15 = arith.constant 0 : index
    %21 = vector.load %arg8[%c0_14, %c0_15] : memref<32x128xf32, #tpu.memory_space<vmem>>, vector<32x128xf32>
    tpu.vector_store %arg8[%c0_14, %c0_15], %20 {strides = array<i32>} : memref<32x128xf32, #tpu.memory_space<vmem>>, vector<32x128xf32>,
    %c0_i32_16 = arith.constant 0 : i32
    %22 = arith.cmpi eq, %arg1, %c0_i32_16 : i32
    %23 = arith.extui %22 : i1 to i32
    %c0_i32_17 = arith.constant 0 : i32
    %24 = arith.cmpi ne, %23, %c0_i32_17 : i32
    scf.if %24 {
      %c0_18 = arith.constant 0 : index
      %c0_19 = arith.constant 0 : index
      %25 = vector.load %arg8[%c0_18, %c0_19] : memref<32x128xf32, #tpu.memory_space<vmem>>, vector<32x128xf32>
      %c0_20 = arith.constant 0 : index
      %c0_21 = arith.constant 0 : index
      %26 = vector.load %arg6[%c0_20, %c0_21] : memref<1x128xf32, #tpu.memory_space<vmem>>, vector<1x128xf32>
      %27 = vector.broadcast %26 : vector<1x128xf32> to vector<32x128xf32>
      %28 = arith.addf %25, %27 : vector<32x128xf32>
      %29 = arith.addf %3, %28 : vector<32x128xf32>
      %c0_22 = arith.constant 0 : index
      %c0_23 = arith.constant 0 : index
      %30 = vector.load %arg7[%c0_22, %c0_23] : memref<32x128xf32, #tpu.memory_space<vmem>>, vector<32x128xf32>
      tpu.vector_store %arg7[%c0_22, %c0_23], %29 {strides = array<i32>} : memref<32x128xf32, #tpu.memory_space<vmem>>, vector<32x128xf32>,
    } else {
    }
    return
  }
  func.func @transform_0(%arg0: i32, %arg1: i32) -> (i32, i32) {
    %c0_i32 = arith.constant 0 : i32
    %c0_i32_0 = arith.constant 0 : i32
    return %arg0, %c0_i32 : i32, i32
  }
  func.func @transform_1(%arg0: i32, %arg1: i32) -> (i32, i32) {
    %c0_i32 = arith.constant 0 : i32
    %c0_i32_0 = arith.constant 0 : i32
    return %c0_i32, %arg1 : i32, i32
  }
  func.func @transform_2(%arg0: i32, %arg1: i32) -> (i32, i32) {
    %c0_i32 = arith.constant 0 : i32
    %c0_i32_0 = arith.constant 0 : i32
    return %c0_i32, %arg1 : i32, i32
  }
  func.func @transform_3(%arg0: i32, %arg1: i32) -> (i32, i32) {
    %c0_i32 = arith.constant 0 : i32
    %c0_i32_0 = arith.constant 0 : i32
    return %arg1, %c0_i32 : i32, i32
  }
  func.func @transform_4(%arg0: i32, %arg1: i32) -> (i32, i32) {
    %c0_i32 = arith.constant 0 : i32
    %c0_i32_0 = arith.constant 0 : i32
    %c0_i32_1 = arith.constant 0 : i32
    return %c0_i32, %c0_i32_0 : i32, i32
  }
  func.func @transform_5(%arg0: i32, %arg1: i32) -> (i32, i32) {
    %c0_i32 = arith.constant 0 : i32
    %c0_i32_0 = arith.constant 0 : i32
    return %arg0, %c0_i32 : i32, i32
  }
}

module attributes {stable_mosaic.version = 11 : i64} {
  func.func @_attn_block_kernel(%arg0: i32, %arg1: i32, %arg2: memref<1x16x128xf32, #tpu.memory_space<vmem>>, %arg3: memref<1x128x32xf32, #tpu.memory_space<vmem>>, %arg4: memref<1x128x32xf32, #tpu.memory_space<vmem>>, %arg5: memref<32x128xf32, #tpu.memory_space<vmem>>, %arg6: memref<1x128xf32, #tpu.memory_space<vmem>>, %arg7: memref<1x128xf32, #tpu.memory_space<vmem>>, %arg8: memref<1x128xf32, #tpu.memory_space<vmem>>, %arg9: memref<1x128xf32, #tpu.memory_space<vmem>>, %arg10: memref<1x128xf32, #tpu.memory_space<vmem>>, %arg11: memref<1x16x128xf32, #tpu.memory_space<vmem>>, %arg12: memref<16x128xf32, #tpu.memory_space<vmem>>) attributes {dimension_semantics = [#tpu.dimension_semantics<parallel>, #tpu.dimension_semantics<arbitrary>], iteration_bounds = array<i64: 2, 4>, scalar_prefetch = 0 : i64, scratch_operands = 1 : i64, tpu.core_type = #tpu.core_type<tc>, window_params = [{transform_indices = @transform_0, window_bounds = array<i64: 1, 16, 128>}, {transform_indices = @transform_1, window_bounds = array<i64: 1, 128, 32>}, {transform_indices = @transform_2, window_bounds = array<i64: 1, 128, 32>}, {transform_indices = @transform_3, window_bounds = array<i64: 32, 128>}, {pipeline_mode = #tpu.pipeline_mode<synchronous>, transform_indices = @transform_4, window_bounds = array<i64: 1, 128>}, {pipeline_mode = #tpu.pipeline_mode<synchronous>, transform_indices = @transform_5, window_bounds = array<i64: 1, 128>}, {pipeline_mode = #tpu.pipeline_mode<synchronous>, transform_indices = @transform_6, window_bounds = array<i64: 1, 128>}, {pipeline_mode = #tpu.pipeline_mode<synchronous>, transform_indices = @transform_7, window_bounds = array<i64: 1, 128>}, {pipeline_mode = #tpu.pipeline_mode<synchronous>, transform_indices = @transform_8, window_bounds = array<i64: 1, 128>}, {transform_indices = @transform_9, window_bounds = array<i64: 1, 16, 128>}]} {
    %c0_i32 = arith.constant 0 : i32
    %0 = arith.cmpi eq, %arg1, %c0_i32 : i32
    %1 = arith.extui %0 : i1 to i32
    %c0_i32_0 = arith.constant 0 : i32
    %2 = arith.cmpi ne, %1, %c0_i32_0 : i32
    scf.if %2 {
      %cst_23 = arith.constant 0.000000e+00 : f32
      %32 = vector.broadcast %cst_23 : f32 to vector<16x128xf32>
      %c0_24 = arith.constant 0 : index
      %c0_25 = arith.constant 0 : index
      %33 = vector.load %arg12[%c0_24, %c0_25] : memref<16x128xf32, #tpu.memory_space<vmem>>, vector<16x128xf32>
      tpu.vector_store %arg12[%c0_24, %c0_25], %32 {strides = array<i32>} : memref<16x128xf32, #tpu.memory_space<vmem>>, vector<16x128xf32>,
    } else {
    }
    %c0 = arith.constant 0 : index
    %c0_1 = arith.constant 0 : index
    %c0_2 = arith.constant 0 : index
    %3 = vector.load %arg2[%c0, %c0_1, %c0_2] : memref<1x16x128xf32, #tpu.memory_space<vmem>>, vector<1x16x128xf32>
    %4 = vector.shape_cast %3 : vector<1x16x128xf32> to vector<16x128xf32>
    %c0_3 = arith.constant 0 : index
    %c0_4 = arith.constant 0 : index
    %c0_5 = arith.constant 0 : index
    %5 = vector.load %arg3[%c0_3, %c0_4, %c0_5] : memref<1x128x32xf32, #tpu.memory_space<vmem>>, vector<1x128x32xf32>
    %6 = vector.shape_cast %5 : vector<1x128x32xf32> to vector<128x32xf32>
    %cst = arith.constant dense<0.000000e+00> : vector<16x32xf32>
    %7 = tpu.matmul %4, %6, %cst {dimension_numbers = #tpu.dot_dimension_numbers<[1], [0], [0], [1], [0, 0, 1, 1], [], []>} : vector<16x128xf32>, vector<128x32xf32>, vector<16x32xf32> -> vector<16x32xf32>
    %c0_6 = arith.constant 0 : index
    %c0_7 = arith.constant 0 : index
    %c0_8 = arith.constant 0 : index
    %8 = vector.load %arg4[%c0_6, %c0_7, %c0_8] : memref<1x128x32xf32, #tpu.memory_space<vmem>>, vector<1x128x32xf32>
    %9 = vector.shape_cast %8 : vector<1x128x32xf32> to vector<128x32xf32>
    %cst_9 = arith.constant dense<0.000000e+00> : vector<16x32xf32>
    %10 = tpu.matmul %4, %9, %cst_9 {dimension_numbers = #tpu.dot_dimension_numbers<[1], [0], [0], [1], [0, 0, 1, 1], [], []>} : vector<16x128xf32>, vector<128x32xf32>, vector<16x32xf32> -> vector<16x32xf32>
    %cst_10 = arith.constant 0.176776692 : f32
    %11 = vector.broadcast %cst_10 : f32 to vector<16x32xf32>
    %12 = arith.mulf %7, %11 : vector<16x32xf32>
    %cst_11 = arith.constant dense<0.000000e+00> : vector<16x16xf32>
    %13 = tpu.matmul %12, %7, %cst_11 {dimension_numbers = #tpu.dot_dimension_numbers<[1], [1], [0], [0], [0, 0, 1, 0], [], []>} : vector<16x32xf32>, vector<16x32xf32>, vector<16x16xf32> -> vector<16x16xf32>
    %cst_12 = arith.constant dense<0xFF800000> : vector<16xf32>
    %14 = vector.multi_reduction <maximumf>, %13, %cst_12 [1] : vector<16x16xf32> to vector<16xf32>
    %15 = vector.shape_cast %14 : vector<16xf32> to vector<16x1xf32>
    %16 = vector.broadcast %15 : vector<16x1xf32> to vector<16x16xf32>
    %17 = arith.subf %13, %16 : vector<16x16xf32>
    %18 = math.exp %17 : vector<16x16xf32>
    %cst_13 = arith.constant dense<0.000000e+00> : vector<16xf32>
    %19 = vector.multi_reduction <add>, %18, %cst_13 [1] : vector<16x16xf32> to vector<16xf32>
    %20 = vector.shape_cast %19 : vector<16xf32> to vector<16x1xf32>
    %21 = vector.broadcast %20 : vector<16x1xf32> to vector<16x16xf32>
    %22 = arith.divf %18, %21 : vector<16x16xf32>
    %cst_14 = arith.constant dense<0.000000e+00> : vector<16x32xf32>
    %23 = tpu.matmul %22, %10, %cst_14 {dimension_numbers = #tpu.dot_dimension_numbers<[1], [0], [0], [1], [0, 0, 1, 1], [], []>} : vector<16x16xf32>, vector<16x32xf32>, vector<16x32xf32> -> vector<16x32xf32>
    %c0_15 = arith.constant 0 : index
    %c0_16 = arith.constant 0 : index
    %24 = vector.load %arg12[%c0_15, %c0_16] : memref<16x128xf32, #tpu.memory_space<vmem>>, vector<16x128xf32>
    %c0_17 = arith.constant 0 : index
    %c0_18 = arith.constant 0 : index
    %25 = vector.load %arg5[%c0_17, %c0_18] : memref<32x128xf32, #tpu.memory_space<vmem>>, vector<32x128xf32>
    %cst_19 = arith.constant dense<0.000000e+00> : vector<16x128xf32>
    %26 = tpu.matmul %23, %25, %cst_19 {dimension_numbers = #tpu.dot_dimension_numbers<[1], [0], [0], [1], [0, 0, 1, 1], [], []>} : vector<16x32xf32>, vector<32x128xf32>, vector<16x128xf32> -> vector<16x128xf32>
    %27 = arith.addf %24, %26 : vector<16x128xf32>
    %c0_20 = arith.constant 0 : index
    %c0_21 = arith.constant 0 : index
    %28 = vector.load %arg12[%c0_20, %c0_21] : memref<16x128xf32, #tpu.memory_space<vmem>>, vector<16x128xf32>
    tpu.vector_store %arg12[%c0_20, %c0_21], %27 {strides = array<i32>} : memref<16x128xf32, #tpu.memory_space<vmem>>, vector<16x128xf32>,
    %c3_i32 = arith.constant 3 : i32
    %29 = arith.cmpi eq, %arg1, %c3_i32 : i32
    %30 = arith.extui %29 : i1 to i32
    %c0_i32_22 = arith.constant 0 : i32
    %31 = arith.cmpi ne, %30, %c0_i32_22 : i32
    scf.if %31 {
      %c0_23 = arith.constant 0 : index
      %c0_24 = arith.constant 0 : index
      %32 = vector.load %arg12[%c0_23, %c0_24] : memref<16x128xf32, #tpu.memory_space<vmem>>, vector<16x128xf32>
      %c0_25 = arith.constant 0 : index
      %c0_26 = arith.constant 0 : index
      %33 = vector.load %arg6[%c0_25, %c0_26] : memref<1x128xf32, #tpu.memory_space<vmem>>, vector<1x128xf32>
      %34 = vector.broadcast %33 : vector<1x128xf32> to vector<16x128xf32>
      %35 = arith.addf %32, %34 : vector<16x128xf32>
      %c0_27 = arith.constant 0 : index
      %c0_28 = arith.constant 0 : index
      %36 = vector.load %arg7[%c0_27, %c0_28] : memref<1x128xf32, #tpu.memory_space<vmem>>, vector<1x128xf32>
      %c0_29 = arith.constant 0 : index
      %c0_30 = arith.constant 0 : index
      %37 = vector.load %arg8[%c0_29, %c0_30] : memref<1x128xf32, #tpu.memory_space<vmem>>, vector<1x128xf32>
      %cst_31 = arith.constant dense<0.000000e+00> : vector<16xf32>
      %38 = vector.multi_reduction <add>, %4, %cst_31 [1] : vector<16x128xf32> to vector<16xf32>
      %39 = vector.shape_cast %38 : vector<16xf32> to vector<16x1xf32>
      %cst_32 = arith.constant 1.280000e+02 : f32
      %40 = vector.broadcast %cst_32 : f32 to vector<16x1xf32>
      %41 = arith.divf %39, %40 : vector<16x1xf32>
      %42 = vector.broadcast %41 : vector<16x1xf32> to vector<16x128xf32>
      %43 = arith.subf %4, %42 : vector<16x128xf32>
      %44 = arith.mulf %43, %43 : vector<16x128xf32>
      %cst_33 = arith.constant dense<0.000000e+00> : vector<16xf32>
      %45 = vector.multi_reduction <add>, %44, %cst_33 [1] : vector<16x128xf32> to vector<16xf32>
      %46 = vector.shape_cast %45 : vector<16xf32> to vector<16x1xf32>
      %cst_34 = arith.constant 1.280000e+02 : f32
      %47 = vector.broadcast %cst_34 : f32 to vector<16x1xf32>
      %48 = arith.divf %46, %47 : vector<16x1xf32>
      %cst_35 = arith.constant 9.99999974E-6 : f32
      %49 = vector.broadcast %cst_35 : f32 to vector<16x1xf32>
      %50 = arith.addf %48, %49 : vector<16x1xf32>
      %51 = math.rsqrt %50 : vector<16x1xf32>
      %52 = vector.broadcast %51 : vector<16x1xf32> to vector<16x128xf32>
      %53 = arith.mulf %43, %52 : vector<16x128xf32>
      %54 = vector.broadcast %36 : vector<1x128xf32> to vector<16x128xf32>
      %55 = arith.mulf %53, %54 : vector<16x128xf32>
      %56 = vector.broadcast %37 : vector<1x128xf32> to vector<16x128xf32>
      %57 = arith.addf %55, %56 : vector<16x128xf32>
      %58 = arith.addf %57, %35 : vector<16x128xf32>
      %c0_36 = arith.constant 0 : index
      %c0_37 = arith.constant 0 : index
      %59 = vector.load %arg9[%c0_36, %c0_37] : memref<1x128xf32, #tpu.memory_space<vmem>>, vector<1x128xf32>
      %c0_38 = arith.constant 0 : index
      %c0_39 = arith.constant 0 : index
      %60 = vector.load %arg10[%c0_38, %c0_39] : memref<1x128xf32, #tpu.memory_space<vmem>>, vector<1x128xf32>
      %cst_40 = arith.constant dense<0.000000e+00> : vector<16xf32>
      %61 = vector.multi_reduction <add>, %58, %cst_40 [1] : vector<16x128xf32> to vector<16xf32>
      %62 = vector.shape_cast %61 : vector<16xf32> to vector<16x1xf32>
      %cst_41 = arith.constant 1.280000e+02 : f32
      %63 = vector.broadcast %cst_41 : f32 to vector<16x1xf32>
      %64 = arith.divf %62, %63 : vector<16x1xf32>
      %65 = vector.broadcast %64 : vector<16x1xf32> to vector<16x128xf32>
      %66 = arith.subf %58, %65 : vector<16x128xf32>
      %67 = arith.mulf %66, %66 : vector<16x128xf32>
      %cst_42 = arith.constant dense<0.000000e+00> : vector<16xf32>
      %68 = vector.multi_reduction <add>, %67, %cst_42 [1] : vector<16x128xf32> to vector<16xf32>
      %69 = vector.shape_cast %68 : vector<16xf32> to vector<16x1xf32>
      %cst_43 = arith.constant 1.280000e+02 : f32
      %70 = vector.broadcast %cst_43 : f32 to vector<16x1xf32>
      %71 = arith.divf %69, %70 : vector<16x1xf32>
      %cst_44 = arith.constant 9.99999974E-6 : f32
      %72 = vector.broadcast %cst_44 : f32 to vector<16x1xf32>
      %73 = arith.addf %71, %72 : vector<16x1xf32>
      %74 = math.rsqrt %73 : vector<16x1xf32>
      %75 = vector.broadcast %74 : vector<16x1xf32> to vector<16x128xf32>
      %76 = arith.mulf %66, %75 : vector<16x128xf32>
      %77 = vector.broadcast %59 : vector<1x128xf32> to vector<16x128xf32>
      %78 = arith.mulf %76, %77 : vector<16x128xf32>
      %79 = vector.broadcast %60 : vector<1x128xf32> to vector<16x128xf32>
      %80 = arith.addf %78, %79 : vector<16x128xf32>
      %c0_45 = arith.constant 0 : index
      %c0_46 = arith.constant 0 : index
      %c0_47 = arith.constant 0 : index
      %81 = vector.load %arg11[%c0_45, %c0_46, %c0_47] : memref<1x16x128xf32, #tpu.memory_space<vmem>>, vector<1x16x128xf32>
      %82 = vector.shape_cast %81 : vector<1x16x128xf32> to vector<16x128xf32>
      %83 = vector.shape_cast %80 : vector<16x128xf32> to vector<1x16x128xf32>
      tpu.vector_store %arg11[%c0_45, %c0_46, %c0_47], %83 {strides = array<i32>} : memref<1x16x128xf32, #tpu.memory_space<vmem>>, vector<1x16x128xf32>,
    } else {
    }
    return
  }
  func.func @transform_0(%arg0: i32, %arg1: i32) -> (i32, i32, i32) {
    %c0_i32 = arith.constant 0 : i32
    %c0_i32_0 = arith.constant 0 : i32
    %c0_i32_1 = arith.constant 0 : i32
    return %arg0, %c0_i32, %c0_i32_0 : i32, i32, i32
  }
  func.func @transform_1(%arg0: i32, %arg1: i32) -> (i32, i32, i32) {
    %c0_i32 = arith.constant 0 : i32
    %c0_i32_0 = arith.constant 0 : i32
    %c0_i32_1 = arith.constant 0 : i32
    return %arg1, %c0_i32, %c0_i32_0 : i32, i32, i32
  }
  func.func @transform_2(%arg0: i32, %arg1: i32) -> (i32, i32, i32) {
    %c0_i32 = arith.constant 0 : i32
    %c0_i32_0 = arith.constant 0 : i32
    %c0_i32_1 = arith.constant 0 : i32
    return %arg1, %c0_i32, %c0_i32_0 : i32, i32, i32
  }
  func.func @transform_3(%arg0: i32, %arg1: i32) -> (i32, i32) {
    %c0_i32 = arith.constant 0 : i32
    %c0_i32_0 = arith.constant 0 : i32
    return %arg1, %c0_i32 : i32, i32
  }
  func.func @transform_4(%arg0: i32, %arg1: i32) -> (i32, i32) {
    %c0_i32 = arith.constant 0 : i32
    %c0_i32_0 = arith.constant 0 : i32
    %c0_i32_1 = arith.constant 0 : i32
    return %c0_i32, %c0_i32_0 : i32, i32
  }
  func.func @transform_5(%arg0: i32, %arg1: i32) -> (i32, i32) {
    %c0_i32 = arith.constant 0 : i32
    %c0_i32_0 = arith.constant 0 : i32
    %c0_i32_1 = arith.constant 0 : i32
    return %c0_i32, %c0_i32_0 : i32, i32
  }
  func.func @transform_6(%arg0: i32, %arg1: i32) -> (i32, i32) {
    %c0_i32 = arith.constant 0 : i32
    %c0_i32_0 = arith.constant 0 : i32
    %c0_i32_1 = arith.constant 0 : i32
    return %c0_i32, %c0_i32_0 : i32, i32
  }
  func.func @transform_7(%arg0: i32, %arg1: i32) -> (i32, i32) {
    %c0_i32 = arith.constant 0 : i32
    %c0_i32_0 = arith.constant 0 : i32
    %c0_i32_1 = arith.constant 0 : i32
    return %c0_i32, %c0_i32_0 : i32, i32
  }
  func.func @transform_8(%arg0: i32, %arg1: i32) -> (i32, i32) {
    %c0_i32 = arith.constant 0 : i32
    %c0_i32_0 = arith.constant 0 : i32
    %c0_i32_1 = arith.constant 0 : i32
    return %c0_i32, %c0_i32_0 : i32, i32
  }
  func.func @transform_9(%arg0: i32, %arg1: i32) -> (i32, i32, i32) {
    %c0_i32 = arith.constant 0 : i32
    %c0_i32_0 = arith.constant 0 : i32
    %c0_i32_1 = arith.constant 0 : i32
    return %arg0, %c0_i32, %c0_i32_0 : i32, i32, i32
  }
}

</mosaic_0001>

<llo_original>
// kernel: transformer_decoder_block.3
$region0: #{transformer_decoder_block.3}
  #allocation0 [shape = 'u32[]', space=smem, size = 0x4, offset = 0x4, fixed_abs, tag = 'smem constant byte address 0x4 - core index']
  #allocation1 [shape = 'u32[72,128]{1,0:T(1,128)}', space=vmem, size = 0x9000, scoped, tag = 'internal scratch']
  #allocation2 [shape = 'f32[32,128]{1,0:T(8,128)}', space=vmem, size = 0x4000, scoped, tag = 'scratch operand']
  %s0 = inlined_call_operand.vmem [shape: f32[32,128], index: 0, kind: input, shape index: {}]
  %s1 = inlined_call_operand.vmem [shape: f32[128,256], index: 1, kind: input, shape index: {}]
  %s2 = inlined_call_operand.vmem [shape: f32[1,256], index: 2, kind: input, shape index: {}]
  %s3 = inlined_call_operand.vmem [shape: f32[256,128], index: 3, kind: input, shape index: {}]
  %s4 = inlined_call_operand.vmem [shape: f32[1,128], index: 4, kind: input, shape index: {}]
  %s5 = inlined_call_operand.hbm [shape: f32[32,128], index: 5, kind: output, shape index: {}]
  %s6 = sld [smem:[#allocation0]]
  $region38: #{transformer_decoder_block.3} parent=0
    _
  %s8 = ssub.s32 1, %s6
  %s9 = scalar_select 0, %s8, %s6
  $region1: #{transformer_decoder_block.3} parent=0
    #allocation3 [shape = 'u8[16384]{0}', space=vmem, size = 0x4000, scoped, tag = 'output window, operand 0, single buffered']
    #allocation4 [shape = 's32[1]{0}', space=sflag, size = 0x4, scoped, tag = 'scoped memory for transformer_decoder_block.3']
    %10 = vsyncpa [#allocation4], 0
    // Predicated region
    $region2: #{transformer_decoder_block.3} parent=1 // pred_check
      _
    $region3: #{transformer_decoder_block.3} parent=1 // pred_check_branch
      %12 = sbr.rel (0) target = $region5
    $region4: #{transformer_decoder_block.3} parent=1 // pred_region
      _
    $region5: #{transformer_decoder_block.3} parent=1 // pred_fallthru
      _
    // Predicated region
    $region6: #{transformer_decoder_block.3} parent=1 // pred_check
      _
    $region7: #{transformer_decoder_block.3} parent=1 // pred_check_branch
      %14 = sbr.rel (0) target = $region9
    $region8: #{transformer_decoder_block.3} parent=1 // pred_region
      _
    $region9: #{transformer_decoder_block.3} parent=1 // pred_fallthru
      _
    // Predicated region
    $region10: #{transformer_decoder_block.3} parent=1 // pred_check
      _
    $region11: #{transformer_decoder_block.3} parent=1 // pred_check_branch
      %16 = sbr.rel (0) target = $region13
    $region12: #{transformer_decoder_block.3} parent=1 // pred_region
      _
    $region13: #{transformer_decoder_block.3} parent=1 // pred_fallthru
      _
    // Predicated region
    $region14: #{transformer_decoder_block.3} parent=1 // pred_check
      _
    $region15: #{transformer_decoder_block.3} parent=1 // pred_check_branch
      %18 = sbr.rel (0) target = $region17
    $region16: #{transformer_decoder_block.3} parent=1 // pred_region
      _
    $region17: #{transformer_decoder_block.3} parent=1 // pred_fallthru
      _
    // Predicated region
    $region18: #{transformer_decoder_block.3} parent=1 // pred_check
      _
    $region19: #{transformer_decoder_block.3} parent=1 // pred_check_branch
      %20 = sbr.rel (0) target = $region21
    $region20: #{transformer_decoder_block.3} parent=1 // pred_region
      _
    $region21: #{transformer_decoder_block.3} parent=1 // pred_fallthru
      _
    %p21 = scmp.eq.s32.totalorder 0, 0
    // Predicated region
    $region22: #{transformer_decoder_block.3} parent=1 // pred_check
      %p22 = pneg %p21
    $region23: #{transformer_decoder_block.3} parent=1 // pred_check_branch
      %24 = sbr.rel (%p22) target = $region25
    $region24: #{transformer_decoder_block.3} parent=1 // pred_region
      %25 = vst [vmem:[#allocation2] sm:$0xff] 0.0
      %26 = vst [vmem:[#allocation2 + $0x8] sm:$0xff] 0.0
      %27 = vst [vmem:[#allocation2 + $0x10] sm:$0xff] 0.0
      %28 = vst [vmem:[#allocation2 + $0x18] sm:$0xff] 0.0
    $region25: #{transformer_decoder_block.3} parent=1 // pred_fallthru
      _
    %v29 = vld [vmem:[%s0] sm:$0xff]
    %v30 = vld [vmem:[%s0 + $0x8] sm:$0xff]
    %v31 = vld [vmem:[%s0 + $0x10] sm:$0xff]
    %v32 = vld [vmem:[%s0 + $0x18] sm:$0xff]
    %v33 = vld [vmem:[%s1] sm:$0xff]
    %v34 = vld [vmem:[%s1 + $0x8] sm:$0xff]
    %v35 = vld [vmem:[%s1 + $0x10] sm:$0xff]
    %v36 = vld [vmem:[%s1 + $0x18] sm:$0xff]
    %v37 = vld [vmem:[%s1 + $0x20] sm:$0xff]
    %v38 = vld [vmem:[%s1 + $0x28] sm:$0xff]
    %v39 = vld [vmem:[%s1 + $0x30] sm:$0xff]
    %v40 = vld [vmem:[%s1 + $0x38] sm:$0xff]
    %v41 = vld [vmem:[%s1 + $0x40] sm:$0xff]
    %v42 = vld [vmem:[%s1 + $0x48] sm:$0xff]
    %v43 = vld [vmem:[%s1 + $0x50] sm:$0xff]
    %v44 = vld [vmem:[%s1 + $0x58] sm:$0xff]
    %v45 = vld [vmem:[%s1 + $0x60] sm:$0xff]
    %v46 = vld [vmem:[%s1 + $0x68] sm:$0xff]
    %v47 = vld [vmem:[%s1 + $0x70] sm:$0xff]
    %v48 = vld [vmem:[%s1 + $0x78] sm:$0xff]
    %v49 = vld [vmem:[%s1 + $0x80] sm:$0xff]
    %v50 = vld [vmem:[%s1 + $0x88] sm:$0xff]
    %v51 = vld [vmem:[%s1 + $0x90] sm:$0xff]
    %v52 = vld [vmem:[%s1 + $0x98] sm:$0xff]
    %v53 = vld [vmem:[%s1 + $0xa0] sm:$0xff]
    %v54 = vld [vmem:[%s1 + $0xa8] sm:$0xff]
    %v55 = vld [vmem:[%s1 + $0xb0] sm:$0xff]
    %v56 = vld [vmem:[%s1 + $0xb8] sm:$0xff]
    %v57 = vld [vmem:[%s1 + $0xc0] sm:$0xff]
    %v58 = vld [vmem:[%s1 + $0xc8] sm:$0xff]
    %v59 = vld [vmem:[%s1 + $0xd0] sm:$0xff]
    %v60 = vld [vmem:[%s1 + $0xd8] sm:$0xff]
    %v61 = vld [vmem:[%s1 + $0xe0] sm:$0xff]
    %v62 = vld [vmem:[%s1 + $0xe8] sm:$0xff]
    %v63 = vld [vmem:[%s1 + $0xf0] sm:$0xff]
    %v64 = vld [vmem:[%s1 + $0xf8] sm:$0xff]
    %v65 = vld [vmem:[%s2] sm:$0x3]
    %v67 = vperm.slane %v65, 0
    %v68 = vperm.slane %v65, 1
    %71 = vmatpush.msra.mxu0 %v63
    %72 = vmatpush.msra.mxu0 %v61
    %73 = vmatpush.msra.mxu0 %v59
    %74 = vmatpush.msra.mxu0 %v57
    %75 = vmatpush.msra.mxu0 %v55
    %76 = vmatpush.msra.mxu0 %v53
    %77 = vmatpush.msra.mxu0 %v51
    %78 = vmatpush.msra.mxu0 %v49
    %79 = vmatpush.msra.mxu0 %v47
    %80 = vmatpush.msra.mxu0 %v45
    %81 = vmatpush.msra.mxu0 %v43
    %82 = vmatpush.msra.mxu0 %v41
    %83 = vmatpush.msra.mxu0 %v39
    %84 = vmatpush.msra.mxu0 %v37
    %85 = vmatpush.msra.mxu0 %v35
    %86 = vmatpush.msra.mxu0 %v33
    %87 = vmatmul.f32.gmra.mxu0 %v29
    %v88 = vpop.f32.mrf.mxu0
    %v89 = vadd.f32 %v67, %v88
    %90 = vmatmul.f32.gmra.mxu0 %v30
    %v91 = vpop.f32.mrf.mxu0
    %v92 = vadd.f32 %v67, %v91
    %93 = vmatmul.f32.gmra.mxu0 %v31
    %v94 = vpop.f32.mrf.mxu0
    %v95 = vadd.f32 %v67, %v94
    %96 = vmatmul.f32.gmra.mxu0 %v32
    %v97 = vpop.f32.mrf.mxu0
    %v98 = vadd.f32 %v67, %v97
    %99 = vdwg.mxu0
    %100 = vmatpush.msra.mxu0 %v64
    %101 = vmatpush.msra.mxu0 %v62
    %102 = vmatpush.msra.mxu0 %v60
    %103 = vmatpush.msra.mxu0 %v58
    %104 = vmatpush.msra.mxu0 %v56
    %105 = vmatpush.msra.mxu0 %v54
    %106 = vmatpush.msra.mxu0 %v52
    %107 = vmatpush.msra.mxu0 %v50
    %108 = vmatpush.msra.mxu0 %v48
    %109 = vmatpush.msra.mxu0 %v46
    %110 = vmatpush.msra.mxu0 %v44
    %111 = vmatpush.msra.mxu0 %v42
    %112 = vmatpush.msra.mxu0 %v40
    %113 = vmatpush.msra.mxu0 %v38
    %114 = vmatpush.msra.mxu0 %v36
    %115 = vmatpush.msra.mxu0 %v34
    %116 = vmatmul.f32.gmra.mxu0 %v29
    %v117 = vpop.f32.mrf.mxu0
    %v118 = vadd.f32 %v68, %v117
    %119 = vmatmul.f32.gmra.mxu0 %v30
    %v120 = vpop.f32.mrf.mxu0
    %v121 = vadd.f32 %v68, %v120
    %122 = vmatmul.f32.gmra.mxu0 %v31
    %v123 = vpop.f32.mrf.mxu0
    %v124 = vadd.f32 %v68, %v123
    %125 = vmatmul.f32.gmra.mxu0 %v32
    %v126 = vpop.f32.mrf.mxu0
    %v127 = vadd.f32 %v68, %v126
    %128 = vdwg.mxu0
    %v129 = vmul.f32 %v89, 0.5
    %v130 = vmul.f32 %v118, 0.5
    %v131 = vmul.f32 %v92, 0.5
    %v132 = vmul.f32 %v121, 0.5
    %v133 = vmul.f32 %v95, 0.5
    %v134 = vmul.f32 %v124, 0.5
    %v135 = vmul.f32 %v98, 0.5
    %v136 = vmul.f32 %v127, 0.5
    %v137 = vmul.f32 %v89, 0.70710677
    %v138 = vmul.f32 %v118, 0.70710677
    %v139 = vmul.f32 %v92, 0.70710677
    %v140 = vmul.f32 %v121, 0.70710677
    %v141 = vmul.f32 %v95, 0.70710677
    %v142 = vmul.f32 %v124, 0.70710677
    %v143 = vmul.f32 %v98, 0.70710677
    %v144 = vmul.f32 %v127, 0.70710677
    %v145 = vmul.f32 %v137, %v137
    %v146 = vmin.f32 16.0, %v145
    %v147 = vmul.f32 %v146, 2.1237322e-06
    %v148 = vadd.f32 %v147, 0.00028619796
    %v149 = vmul.f32 %v146, %v148
    %v150 = vadd.f32 %v149, 0.0036580483
    %v151 = vmul.f32 %v146, %v150
    %v152 = vadd.f32 %v151, 0.05243302
    %v153 = vmul.f32 %v146, %v152
    %v154 = vadd.f32 %v153, 0.18741608
    %v155 = vmul.f32 %v146, %v154
    %v156 = vadd.f32 %v155, 1.1283791
    %v157 = vmul.f32 %v137, %v156
    %v158 = vmul.f32 %v146, 3.8918573e-05
    %v159 = vadd.f32 %v158, 0.001143296
    %v160 = vmul.f32 %v146, %v159
    %v161 = vadd.f32 %v160, 0.014752088
    %v162 = vmul.f32 %v146, %v161
    %v163 = vadd.f32 %v162, 0.112945676
    %v164 = vmul.f32 %v146, %v163
    %v165 = vadd.f32 %v164, 0.4994258
    %v166 = vmul.f32 %v146, %v165
    %v167 = vadd.f32 %v166, 1.0
    %v168 = vrcp.pop %v167
    %v169 = vmul.f32 %v167, %v168
    %v170 = vsub.f32 1.0, %v169
    %v171 = vmul.f32 %v168, %v170
    %v172 = vadd.f32 %v168, %v171
    %vm173 = vweird.f32 %v167
    %vm174 = vweird.f32 %v168
    %vm175 = vmor %vm173, %vm174
    %v176 = vsel %vm175, %v168, %v172
    %v177 = vand.u32 2147483647, %v167
    %vm178 = vcmp.eq.f32.partialorder %v177, 8.507059e+37
    %v179 = vand.u32 %v167, 2147483648
    %v180 = vor.u32 1.1754944e-38, %v179
    %v181 = vsel %vm178, %v180, %v176
    %v182 = vmul.f32 %v157, %v181
    %v183 = vmin.f32 %v182, 1.0
    %v184 = vmax.f32 %v183, -1.0
    %v185 = vmul.f32 %v138, %v138
    %v186 = vmin.f32 16.0, %v185
    %v187 = vmul.f32 %v186, 2.1237322e-06
    %v188 = vadd.f32 %v187, 0.00028619796
    %v189 = vmul.f32 %v186, %v188
    %v190 = vadd.f32 %v189, 0.0036580483
    %v191 = vmul.f32 %v186, %v190
    %v192 = vadd.f32 %v191, 0.05243302
    %v193 = vmul.f32 %v186, %v192
    %v194 = vadd.f32 %v193, 0.18741608
    %v195 = vmul.f32 %v186, %v194
    %v196 = vadd.f32 %v195, 1.1283791
    %v197 = vmul.f32 %v138, %v196
    %v198 = vmul.f32 %v186, 3.8918573e-05
    %v199 = vadd.f32 %v198, 0.001143296
    %v200 = vmul.f32 %v186, %v199
    %v201 = vadd.f32 %v200, 0.014752088
    %v202 = vmul.f32 %v186, %v201
    %v203 = vadd.f32 %v202, 0.112945676
    %v204 = vmul.f32 %v186, %v203
    %v205 = vadd.f32 %v204, 0.4994258
    %v206 = vmul.f32 %v186, %v205
    %v207 = vadd.f32 %v206, 1.0
    %v208 = vrcp.pop %v207
    %v209 = vmul.f32 %v207, %v208
    %v210 = vsub.f32 1.0, %v209
    %v211 = vmul.f32 %v208, %v210
    %v212 = vadd.f32 %v208, %v211
    %vm213 = vweird.f32 %v207
    %vm214 = vweird.f32 %v208
    %vm215 = vmor %vm213, %vm214
    %v216 = vsel %vm215, %v208, %v212
    %v217 = vand.u32 2147483647, %v207
    %vm218 = vcmp.eq.f32.partialorder %v217, 8.507059e+37
    %v219 = vand.u32 %v207, 2147483648
    %v220 = vor.u32 1.1754944e-38, %v219
    %v221 = vsel %vm218, %v220, %v216
    %v222 = vmul.f32 %v197, %v221
    %v223 = vmin.f32 %v222, 1.0
    %v224 = vmax.f32 %v223, -1.0
    %v225 = vmul.f32 %v139, %v139
    %v226 = vmin.f32 16.0, %v225
    %v227 = vmul.f32 %v226, 2.1237322e-06
    %v228 = vadd.f32 %v227, 0.00028619796
    %v229 = vmul.f32 %v226, %v228
    %v230 = vadd.f32 %v229, 0.0036580483
    %v231 = vmul.f32 %v226, %v230
    %v232 = vadd.f32 %v231, 0.05243302
    %v233 = vmul.f32 %v226, %v232
    %v234 = vadd.f32 %v233, 0.18741608
    %v235 = vmul.f32 %v226, %v234
    %v236 = vadd.f32 %v235, 1.1283791
    %v237 = vmul.f32 %v139, %v236
    %v238 = vmul.f32 %v226, 3.8918573e-05
    %v239 = vadd.f32 %v238, 0.001143296
    %v240 = vmul.f32 %v226, %v239
    %v241 = vadd.f32 %v240, 0.014752088
    %v242 = vmul.f32 %v226, %v241
    %v243 = vadd.f32 %v242, 0.112945676
    %v244 = vmul.f32 %v226, %v243
    %v245 = vadd.f32 %v244, 0.4994258
    %v246 = vmul.f32 %v226, %v245
    %v247 = vadd.f32 %v246, 1.0
    %v248 = vrcp.pop %v247
    %v249 = vmul.f32 %v247, %v248
    %v250 = vsub.f32 1.0, %v249
    %v251 = vmul.f32 %v248, %v250
    %v252 = vadd.f32 %v248, %v251
    %vm253 = vweird.f32 %v247
    %vm254 = vweird.f32 %v248
    %vm255 = vmor %vm253, %vm254
    %v256 = vsel %vm255, %v248, %v252
    %v257 = vand.u32 2147483647, %v247
    %vm258 = vcmp.eq.f32.partialorder %v257, 8.507059e+37
    %v259 = vand.u32 %v247, 2147483648
    %v260 = vor.u32 1.1754944e-38, %v259
    %v261 = vsel %vm258, %v260, %v256
    %v262 = vmul.f32 %v237, %v261
    %v263 = vmin.f32 %v262, 1.0
    %v264 = vmax.f32 %v263, -1.0
    %v265 = vmul.f32 %v140, %v140
    %v266 = vmin.f32 16.0, %v265
    %v267 = vmul.f32 %v266, 2.1237322e-06
    %v268 = vadd.f32 %v267, 0.00028619796
    %v269 = vmul.f32 %v266, %v268
    %v270 = vadd.f32 %v269, 0.0036580483
    %v271 = vmul.f32 %v266, %v270
    %v272 = vadd.f32 %v271, 0.05243302
    %v273 = vmul.f32 %v266, %v272
    %v274 = vadd.f32 %v273, 0.18741608
    %v275 = vmul.f32 %v266, %v274
    %v276 = vadd.f32 %v275, 1.1283791
    %v277 = vmul.f32 %v140, %v276
    %v278 = vmul.f32 %v266, 3.8918573e-05
    %v279 = vadd.f32 %v278, 0.001143296
    %v280 = vmul.f32 %v266, %v279
    %v281 = vadd.f32 %v280, 0.014752088
    %v282 = vmul.f32 %v266, %v281
    %v283 = vadd.f32 %v282, 0.112945676
    %v284 = vmul.f32 %v266, %v283
    %v285 = vadd.f32 %v284, 0.4994258
    %v286 = vmul.f32 %v266, %v285
    %v287 = vadd.f32 %v286, 1.0
    %v288 = vrcp.pop %v287
    %v289 = vmul.f32 %v287, %v288
    %v290 = vsub.f32 1.0, %v289
    %v291 = vmul.f32 %v288, %v290
    %v292 = vadd.f32 %v288, %v291
    %vm293 = vweird.f32 %v287
    %vm294 = vweird.f32 %v288
    %vm295 = vmor %vm293, %vm294
    %v296 = vsel %vm295, %v288, %v292
    %v297 = vand.u32 2147483647, %v287
    %vm298 = vcmp.eq.f32.partialorder %v297, 8.507059e+37
    %v299 = vand.u32 %v287, 2147483648
    %v300 = vor.u32 1.1754944e-38, %v299
    %v301 = vsel %vm298, %v300, %v296
    %v302 = vmul.f32 %v277, %v301
    %v303 = vmin.f32 %v302, 1.0
    %v304 = vmax.f32 %v303, -1.0
    %v305 = vmul.f32 %v141, %v141
    %v306 = vmin.f32 16.0, %v305
    %v307 = vmul.f32 %v306, 2.1237322e-06
    %v308 = vadd.f32 %v307, 0.00028619796
    %v309 = vmul.f32 %v306, %v308
    %v310 = vadd.f32 %v309, 0.0036580483
    %v311 = vmul.f32 %v306, %v310
    %v312 = vadd.f32 %v311, 0.05243302
    %v313 = vmul.f32 %v306, %v312
    %v314 = vadd.f32 %v313, 0.18741608
    %v315 = vmul.f32 %v306, %v314
    %v316 = vadd.f32 %v315, 1.1283791
    %v317 = vmul.f32 %v141, %v316
    %v318 = vmul.f32 %v306, 3.8918573e-05
    %v319 = vadd.f32 %v318, 0.001143296
    %v320 = vmul.f32 %v306, %v319
    %v321 = vadd.f32 %v320, 0.014752088
    %v322 = vmul.f32 %v306, %v321
    %v323 = vadd.f32 %v322, 0.112945676
    %v324 = vmul.f32 %v306, %v323
    %v325 = vadd.f32 %v324, 0.4994258
    %v326 = vmul.f32 %v306, %v325
    %v327 = vadd.f32 %v326, 1.0
    %v328 = vrcp.pop %v327
    %v329 = vmul.f32 %v327, %v328
    %v330 = vsub.f32 1.0, %v329
    %v331 = vmul.f32 %v328, %v330
    %v332 = vadd.f32 %v328, %v331
    %vm333 = vweird.f32 %v327
    %vm334 = vweird.f32 %v328
    %vm335 = vmor %vm333, %vm334
    %v336 = vsel %vm335, %v328, %v332
    %v337 = vand.u32 2147483647, %v327
    %vm338 = vcmp.eq.f32.partialorder %v337, 8.507059e+37
    %v339 = vand.u32 %v327, 2147483648
    %v340 = vor.u32 1.1754944e-38, %v339
    %v341 = vsel %vm338, %v340, %v336
    %v342 = vmul.f32 %v317, %v341
    %v343 = vmin.f32 %v342, 1.0
    %v344 = vmax.f32 %v343, -1.0
    %v345 = vmul.f32 %v142, %v142
    %v346 = vmin.f32 16.0, %v345
    %v347 = vmul.f32 %v346, 2.1237322e-06
    %v348 = vadd.f32 %v347, 0.00028619796
    %v349 = vmul.f32 %v346, %v348
    %v350 = vadd.f32 %v349, 0.0036580483
    %v351 = vmul.f32 %v346, %v350
    %v352 = vadd.f32 %v351, 0.05243302
    %v353 = vmul.f32 %v346, %v352
    %v354 = vadd.f32 %v353, 0.18741608
    %v355 = vmul.f32 %v346, %v354
    %v356 = vadd.f32 %v355, 1.1283791
    %v357 = vmul.f32 %v142, %v356
    %v358 = vmul.f32 %v346, 3.8918573e-05
    %v359 = vadd.f32 %v358, 0.001143296
    %v360 = vmul.f32 %v346, %v359
    %v361 = vadd.f32 %v360, 0.014752088
    %v362 = vmul.f32 %v346, %v361
    %v363 = vadd.f32 %v362, 0.112945676
    %v364 = vmul.f32 %v346, %v363
    %v365 = vadd.f32 %v364, 0.4994258
    %v366 = vmul.f32 %v346, %v365
    %v367 = vadd.f32 %v366, 1.0
    %v368 = vrcp.pop %v367
    %v369 = vmul.f32 %v367, %v368
    %v370 = vsub.f32 1.0, %v369
    %v371 = vmul.f32 %v368, %v370
    %v372 = vadd.f32 %v368, %v371
    %vm373 = vweird.f32 %v367
    %vm374 = vweird.f32 %v368
    %vm375 = vmor %vm373, %vm374
    %v376 = vsel %vm375, %v368, %v372
    %v377 = vand.u32 2147483647, %v367
    %vm378 = vcmp.eq.f32.partialorder %v377, 8.507059e+37
    %v379 = vand.u32 %v367, 2147483648
    %v380 = vor.u32 1.1754944e-38, %v379
    %v381 = vsel %vm378, %v380, %v376
    %v382 = vmul.f32 %v357, %v381
    %v383 = vmin.f32 %v382, 1.0
    %v384 = vmax.f32 %v383, -1.0
    %v385 = vmul.f32 %v143, %v143
    %v386 = vmin.f32 16.0, %v385
    %v387 = vmul.f32 %v386, 2.1237322e-06
    %v388 = vadd.f32 %v387, 0.00028619796
    %v389 = vmul.f32 %v386, %v388
    %v390 = vadd.f32 %v389, 0.0036580483
    %v391 = vmul.f32 %v386, %v390
    %v392 = vadd.f32 %v391, 0.05243302
    %v393 = vmul.f32 %v386, %v392
    %v394 = vadd.f32 %v393, 0.18741608
    %v395 = vmul.f32 %v386, %v394
    %v396 = vadd.f32 %v395, 1.1283791
    %v397 = vmul.f32 %v143, %v396
    %v398 = vmul.f32 %v386, 3.8918573e-05
    %v399 = vadd.f32 %v398, 0.001143296
    %v400 = vmul.f32 %v386, %v399
    %v401 = vadd.f32 %v400, 0.014752088
    %v402 = vmul.f32 %v386, %v401
    %v403 = vadd.f32 %v402, 0.112945676
    %v404 = vmul.f32 %v386, %v403
    %v405 = vadd.f32 %v404, 0.4994258
    %v406 = vmul.f32 %v386, %v405
    %v407 = vadd.f32 %v406, 1.0
    %v408 = vrcp.pop %v407
    %v409 = vmul.f32 %v407, %v408
    %v410 = vsub.f32 1.0, %v409
    %v411 = vmul.f32 %v408, %v410
    %v412 = vadd.f32 %v408, %v411
    %vm413 = vweird.f32 %v407
    %vm414 = vweird.f32 %v408
    %vm415 = vmor %vm413, %vm414
    %v416 = vsel %vm415, %v408, %v412
    %v417 = vand.u32 2147483647, %v407
    %vm418 = vcmp.eq.f32.partialorder %v417, 8.507059e+37
    %v419 = vand.u32 %v407, 2147483648
    %v420 = vor.u32 1.1754944e-38, %v419
    %v421 = vsel %vm418, %v420, %v416
    %v422 = vmul.f32 %v397, %v421
    %v423 = vmin.f32 %v422, 1.0
    %v424 = vmax.f32 %v423, -1.0
    %v425 = vmul.f32 %v144, %v144
    %v426 = vmin.f32 16.0, %v425
    %v427 = vmul.f32 %v426, 2.1237322e-06
    %v428 = vadd.f32 %v427, 0.00028619796
    %v429 = vmul.f32 %v426, %v428
    %v430 = vadd.f32 %v429, 0.0036580483
    %v431 = vmul.f32 %v426, %v430
    %v432 = vadd.f32 %v431, 0.05243302
    %v433 = vmul.f32 %v426, %v432
    %v434 = vadd.f32 %v433, 0.18741608
    %v435 = vmul.f32 %v426, %v434
    %v436 = vadd.f32 %v435, 1.1283791
    %v437 = vmul.f32 %v144, %v436
    %v438 = vmul.f32 %v426, 3.8918573e-05
    %v439 = vadd.f32 %v438, 0.001143296
    %v440 = vmul.f32 %v426, %v439
    %v441 = vadd.f32 %v440, 0.014752088
    %v442 = vmul.f32 %v426, %v441
    %v443 = vadd.f32 %v442, 0.112945676
    %v444 = vmul.f32 %v426, %v443
    %v445 = vadd.f32 %v444, 0.4994258
    %v446 = vmul.f32 %v426, %v445
    %v447 = vadd.f32 %v446, 1.0
    %v448 = vrcp.pop %v447
    %v449 = vmul.f32 %v447, %v448
    %v450 = vsub.f32 1.0, %v449
    %v451 = vmul.f32 %v448, %v450
    %v452 = vadd.f32 %v448, %v451
    %vm453 = vweird.f32 %v447
    %vm454 = vweird.f32 %v448
    %vm455 = vmor %vm453, %vm454
    %v456 = vsel %vm455, %v448, %v452
    %v457 = vand.u32 2147483647, %v447
    %vm458 = vcmp.eq.f32.partialorder %v457, 8.507059e+37
    %v459 = vand.u32 %v447, 2147483648
    %v460 = vor.u32 1.1754944e-38, %v459
    %v461 = vsel %vm458, %v460, %v456
    %v462 = vmul.f32 %v437, %v461
    %v463 = vmin.f32 %v462, 1.0
    %v464 = vmax.f32 %v463, -1.0
    %v465 = vadd.f32 %v184, 1.0
    %v466 = vadd.f32 %v224, 1.0
    %v467 = vadd.f32 %v264, 1.0
    %v468 = vadd.f32 %v304, 1.0
    %v469 = vadd.f32 %v344, 1.0
    %v470 = vadd.f32 %v384, 1.0
    %v471 = vadd.f32 %v424, 1.0
    %v472 = vadd.f32 %v464, 1.0
    %v473 = vmul.f32 %v129, %v465
    %v474 = vmul.f32 %v130, %v466
    %v475 = vmul.f32 %v131, %v467
    %v476 = vmul.f32 %v132, %v468
    %v477 = vmul.f32 %v133, %v469
    %v478 = vmul.f32 %v134, %v470
    %v479 = vmul.f32 %v135, %v471
    %v480 = vmul.f32 %v136, %v472
    %v481 = vld [vmem:[#allocation2] sm:$0xff]
    %v482 = vld [vmem:[#allocation2 + $0x8] sm:$0xff]
    %v483 = vld [vmem:[#allocation2 + $0x10] sm:$0xff]
    %v484 = vld [vmem:[#allocation2 + $0x18] sm:$0xff]
    %v485 = vld [vmem:[%s3] sm:$0xff]
    %v486 = vld [vmem:[%s3 + $0x8] sm:$0xff]
    %v487 = vld [vmem:[%s3 + $0x10] sm:$0xff]
    %v488 = vld [vmem:[%s3 + $0x18] sm:$0xff]
    %v489 = vld [vmem:[%s3 + $0x20] sm:$0xff]
    %v490 = vld [vmem:[%s3 + $0x28] sm:$0xff]
    %v491 = vld [vmem:[%s3 + $0x30] sm:$0xff]
    %v492 = vld [vmem:[%s3 + $0x38] sm:$0xff]
    %v493 = vld [vmem:[%s3 + $0x40] sm:$0xff]
    %v494 = vld [vmem:[%s3 + $0x48] sm:$0xff]
    %v495 = vld [vmem:[%s3 + $0x50] sm:$0xff]
    %v496 = vld [vmem:[%s3 + $0x58] sm:$0xff]
    %v497 = vld [vmem:[%s3 + $0x60] sm:$0xff]
    %v498 = vld [vmem:[%s3 + $0x68] sm:$0xff]
    %v499 = vld [vmem:[%s3 + $0x70] sm:$0xff]
    %v500 = vld [vmem:[%s3 + $0x78] sm:$0xff]
    %v501 = vld [vmem:[%s3 + $0x80] sm:$0xff]
    %v502 = vld [vmem:[%s3 + $0x88] sm:$0xff]
    %v503 = vld [vmem:[%s3 + $0x90] sm:$0xff]
    %v504 = vld [vmem:[%s3 + $0x98] sm:$0xff]
    %v505 = vld [vmem:[%s3 + $0xa0] sm:$0xff]
    %v506 = vld [vmem:[%s3 + $0xa8] sm:$0xff]
    %v507 = vld [vmem:[%s3 + $0xb0] sm:$0xff]
    %v508 = vld [vmem:[%s3 + $0xb8] sm:$0xff]
    %v509 = vld [vmem:[%s3 + $0xc0] sm:$0xff]
    %v510 = vld [vmem:[%s3 + $0xc8] sm:$0xff]
    %v511 = vld [vmem:[%s3 + $0xd0] sm:$0xff]
    %v512 = vld [vmem:[%s3 + $0xd8] sm:$0xff]
    %v513 = vld [vmem:[%s3 + $0xe0] sm:$0xff]
    %v514 = vld [vmem:[%s3 + $0xe8] sm:$0xff]
    %v515 = vld [vmem:[%s3 + $0xf0] sm:$0xff]
    %v516 = vld [vmem:[%s3 + $0xf8] sm:$0xff]
    %517 = vmatpush.msra.mxu0 %v500
    %518 = vmatpush.msra.mxu0 %v499
    %519 = vmatpush.msra.mxu0 %v498
    %520 = vmatpush.msra.mxu0 %v497
    %521 = vmatpush.msra.mxu0 %v496
    %522 = vmatpush.msra.mxu0 %v495
    %523 = vmatpush.msra.mxu0 %v494
    %524 = vmatpush.msra.mxu0 %v493
    %525 = vmatpush.msra.mxu0 %v492
    %526 = vmatpush.msra.mxu0 %v491
    %527 = vmatpush.msra.mxu0 %v490
    %528 = vmatpush.msra.mxu0 %v489
    %529 = vmatpush.msra.mxu0 %v488
    %530 = vmatpush.msra.mxu0 %v487
    %531 = vmatpush.msra.mxu0 %v486
    %532 = vmatpush.msra.mxu0 %v485
    %533 = vmatmul.f32.gmra.mxu0 %v473
    %v534 = vpop.f32.mrf.mxu0
    %v535 = vadd.f32 0.0, %v534
    %536 = vmatmul.f32.gmra.mxu0 %v475
    %v537 = vpop.f32.mrf.mxu0
    %v538 = vadd.f32 0.0, %v537
    %539 = vmatmul.f32.gmra.mxu0 %v477
    %v540 = vpop.f32.mrf.mxu0
    %v541 = vadd.f32 0.0, %v540
    %542 = vmatmul.f32.gmra.mxu0 %v479
    %v543 = vpop.f32.mrf.mxu0
    %v544 = vadd.f32 0.0, %v543
    %545 = vdwg.mxu0
    %546 = vmatpush.msra.mxu0 %v516
    %547 = vmatpush.msra.mxu0 %v515
    %548 = vmatpush.msra.mxu0 %v514
    %549 = vmatpush.msra.mxu0 %v513
    %550 = vmatpush.msra.mxu0 %v512
    %551 = vmatpush.msra.mxu0 %v511
    %552 = vmatpush.msra.mxu0 %v510
    %553 = vmatpush.msra.mxu0 %v509
    %554 = vmatpush.msra.mxu0 %v508
    %555 = vmatpush.msra.mxu0 %v507
    %556 = vmatpush.msra.mxu0 %v506
    %557 = vmatpush.msra.mxu0 %v505
    %558 = vmatpush.msra.mxu0 %v504
    %559 = vmatpush.msra.mxu0 %v503
    %560 = vmatpush.msra.mxu0 %v502
    %561 = vmatpush.msra.mxu0 %v501
    %562 = vmatmul.f32.gmra.mxu0 %v474
    %v563 = vpop.f32.mrf.mxu0
    %v564 = vadd.f32 %v535, %v563
    %565 = vmatmul.f32.gmra.mxu0 %v476
    %v566 = vpop.f32.mrf.mxu0
    %v567 = vadd.f32 %v538, %v566
    %568 = vmatmul.f32.gmra.mxu0 %v478
    %v569 = vpop.f32.mrf.mxu0
    %v570 = vadd.f32 %v541, %v569
    %571 = vmatmul.f32.gmra.mxu0 %v480
    %v572 = vpop.f32.mrf.mxu0
    %v573 = vadd.f32 %v544, %v572
    %574 = vdwg.mxu0
    %v575 = vadd.f32 %v481, %v564
    %v576 = vadd.f32 %v482, %v567
    %v577 = vadd.f32 %v483, %v570
    %v578 = vadd.f32 %v484, %v573
    %579 = vst [vmem:[#allocation2] sm:$0xff] %v575
    %580 = vst [vmem:[#allocation2 + $0x8] sm:$0xff] %v576
    %581 = vst [vmem:[#allocation2 + $0x10] sm:$0xff] %v577
    %582 = vst [vmem:[#allocation2 + $0x18] sm:$0xff] %v578
    // Predicated region
    $region26: #{transformer_decoder_block.3} parent=1 // pred_check
      %p583 = pneg %p21
    $region27: #{transformer_decoder_block.3} parent=1 // pred_check_branch
      %585 = sbr.rel (%p583) target = $region29
    $region28: #{transformer_decoder_block.3} parent=1 // pred_region
      %v586 = vld [vmem:[#allocation2] sm:$0xff]
      %v587 = vld [vmem:[#allocation2 + $0x8] sm:$0xff]
      %v588 = vld [vmem:[#allocation2 + $0x10] sm:$0xff]
      %v589 = vld [vmem:[#allocation2 + $0x18] sm:$0xff]
      %v590 = vld [vmem:[%s4] sm:$0x1]
      %v592 = vperm.slane %v590, 0
      %v594 = vadd.f32 %v586, %v592
      %v595 = vadd.f32 %v587, %v592
      %v596 = vadd.f32 %v588, %v592
      %v597 = vadd.f32 %v589, %v592
      %v598 = vadd.f32 %v29, %v594
      %v599 = vadd.f32 %v30, %v595
      %v600 = vadd.f32 %v31, %v596
      %v601 = vadd.f32 %v32, %v597
      %602 = vst [vmem:[#allocation3] sm:$0xff] %v598
      %603 = vst [vmem:[#allocation3 + $0x8] sm:$0xff] %v599
      %604 = vst [vmem:[#allocation3 + $0x10] sm:$0xff] %v600
      %605 = vst [vmem:[#allocation3 + $0x18] sm:$0xff] %v601
    $region29: #{transformer_decoder_block.3} parent=1 // pred_fallthru
      _
    // Predicated region
    $region30: #{transformer_decoder_block.3} parent=1 // pred_check
      _
    $region31: #{transformer_decoder_block.3} parent=1 // pred_check_branch
      %607 = sbr.rel (0) target = $region33
    $region32: #{transformer_decoder_block.3} parent=1 // pred_region
      %609 = vsyncadd [#allocation4], 0
      %s610 = sshll.u32 [#allocation3], 4
      %s611 = int_to_ptr.vmem [resolvable:$true] %s610
      %s612 = sshll.u32 %s5, 4
      %s613 = int_to_ptr.hbm [resolvable:$true] %s612
      %618 = dma.vmem_to_hbm [thread:$0]  %s611, 512, %s613, [#allocation4], 128, 128, 8
    $region33: #{transformer_decoder_block.3} parent=1 // pred_fallthru
      _
    // Predicated region
    $region34: #{transformer_decoder_block.3} parent=1 // pred_check
      _
    $region35: #{transformer_decoder_block.3} parent=1 // pred_check_branch
      %620 = sbr.rel (0) target = $region37
    $region36: #{transformer_decoder_block.3} parent=1 // pred_region
      %622 = dma.done [#allocation4], 512
    $region37: #{transformer_decoder_block.3} parent=1 // pred_fallthru
      _
    %623 = vsyncpa [#allocation4], 1

// kernel: transformer_decoder_block.2
$region0: #{transformer_decoder_block.2}
  #allocation0 [shape = 'u32[]', space=smem, size = 0x4, offset = 0x4, fixed_abs, tag = 'smem constant byte address 0x4 - core index']
  #allocation1 [shape = 'u32[72,128]{1,0:T(1,128)}', space=vmem, size = 0x9000, scoped, tag = 'internal scratch']
  #allocation2 [shape = 'f32[16,128]{1,0:T(8,128)}', space=vmem, size = 0x2000, scoped, tag = 'scratch operand']
  %s0 = inlined_call_operand.vmem [shape: f32[2,16,128], index: 0, kind: input, shape index: {}]
  %s1 = inlined_call_operand.vmem [shape: f32[4,128,32], index: 1, kind: input, shape index: {}]
  %s2 = inlined_call_operand.vmem [shape: f32[4,128,32], index: 2, kind: input, shape index: {}]
  %s3 = inlined_call_operand.vmem [shape: f32[128,128], index: 3, kind: input, shape index: {}]
  %s4 = inlined_call_operand.vmem [shape: f32[1,128], index: 4, kind: input, shape index: {}]
  %s5 = inlined_call_operand.vmem [shape: f32[1,128], index: 5, kind: input, shape index: {}]
  %s6 = inlined_call_operand.vmem [shape: f32[1,128], index: 6, kind: input, shape index: {}]
  %s7 = inlined_call_operand.vmem [shape: f32[1,128], index: 7, kind: input, shape index: {}]
  %s8 = inlined_call_operand.vmem [shape: f32[1,128], index: 8, kind: input, shape index: {}]
  %s9 = inlined_call_operand.vmem [shape: f32[2,16,128], index: 9, kind: output, shape index: {}]
  %s10 = sld [smem:[#allocation0]]
  $region77: #{transformer_decoder_block.2} parent=0
    _
  %s12 = ssub.s32 1, %s10
  %s13 = scalar_select 0, %s12, %s10
  loop: start=0, step=1, limit=10
  $region2: #{transformer_decoder_block.2} parent=0 // loop_pre_header
    _
  $region3: #{transformer_decoder_block.2} parent=0 // loop_header
    %s15 = sphi 0, %s19
    %p16 = scmp.ge.s32.totalorder %s15, 10
    %s22 = sphi 0, %s34
    %s23 = sphi 0, %s30
    %s24 = sphi 0, %s22
    %s25 = sphi 0, %s23
    %s26 = sphi 0, %s24
    %s27 = sphi 0, %s25
    %s37 = sphi 0, %s39
    %s40 = sphi 0, %s37
    %s41 = sphi 0, %s40
    %s57 = sphi 0, %s41
    %s63 = sphi 0, %s65
    %s66 = sphi 0, %s63
    %s67 = sphi 0, %s66
    %s83 = sphi 0, %s67
    %s89 = sphi 0, %s91
    %s92 = sphi 0, %s89
    %s93 = sphi 0, %s92
    %s109 = sphi 0, %s93
    %s115 = sphi 0, %s117
    %s118 = sphi 0, %s115
    %s119 = sphi 0, %s118
    %s135 = sphi 0, %s119
    %s139 = sphi 0, %s139
    %s141 = sphi 0, %s139
    %s142 = sphi 0, %s141
    %s156 = sphi 0, %s142
    %s160 = sphi 0, %s160
    %s162 = sphi 0, %s160
    %s163 = sphi 0, %s162
    %s177 = sphi 0, %s163
    %s181 = sphi 0, %s181
    %s183 = sphi 0, %s181
    %s184 = sphi 0, %s183
    %s198 = sphi 0, %s184
    %s202 = sphi 0, %s202
    %s204 = sphi 0, %s202
    %s205 = sphi 0, %s204
    %s219 = sphi 0, %s205
    %s223 = sphi 0, %s223
    %s225 = sphi 0, %s223
    %s226 = sphi 0, %s225
    %s240 = sphi 0, %s226
    %s246 = sphi 0, %s248
    %s249 = sphi 0, %s246
    %s250 = sphi 0, %s249
    %s266 = sphi 0, %s250
  $region4: #{transformer_decoder_block.2} parent=0 // loop_header_branch
    %18 = sbr.rel (%p16) target = $region8
  $region5: #{transformer_decoder_block.2} parent=0 // loop_body
    %s20 = ssub.s32 %s15, 1
    %s21 = ssub.s32 %s15, 2
    %s28 = sadd.s32 1, %s23
    %p29 = scmp.ge.s32.totalorder %s28, 4
    %s30 = scalar_select %p29, 0, %s28
    %s31 = sadd.s32 1, %s22
    %s32 = scalar_select %p29, %s31, %s22
    %p33 = scmp.ge.s32.totalorder %s32, 2
    %s34 = scalar_select %p33, 0, %s32
    %s35 = ssub.s32 %s22, %s34
    %p36 = scmp.eq.s32.totalorder %s35, 0
    %s38 = sadd.s32 %s37, 1
    %s39 = scalar_select %p36, %s37, %s38
    %p42 = pneg %p36
    %p43 = scmp.eq.s32.totalorder %s15, 7
    %p44 = por %p42, %p43
    %p45 = scmp.ne.s32.totalorder %s37, %s40
    %p46 = scmp.eq.s32.totalorder %s15, 0
    %p47 = por %p45, %p46
    %p48 = scmp.ne.s32.totalorder %s37, %s40
    %p49 = scmp.eq.s32.totalorder %s20, 7
    %p50 = por %p48, %p49
    %p51 = scmp.ne.s32.totalorder %s40, %s41
    %p52 = scmp.eq.s32.totalorder %s20, 0
    %p53 = por %p51, %p52
    %p54 = scmp.ne.s32.totalorder %s40, %s41
    %p55 = scmp.eq.s32.totalorder %s21, 7
    %p56 = por %p54, %p55
    %p58 = scmp.ne.s32.totalorder %s41, %s57
    %p59 = scmp.eq.s32.totalorder %s21, 0
    %p60 = por %p58, %p59
    %s61 = ssub.s32 %s23, %s30
    %p62 = scmp.eq.s32.totalorder %s61, 0
    %s64 = sadd.s32 %s63, 1
    %s65 = scalar_select %p62, %s63, %s64
    %p68 = pneg %p62
    %p69 = scmp.eq.s32.totalorder %s15, 7
    %p70 = por %p68, %p69
    %p71 = scmp.ne.s32.totalorder %s63, %s66
    %p72 = scmp.eq.s32.totalorder %s15, 0
    %p73 = por %p71, %p72
    %p74 = scmp.ne.s32.totalorder %s63, %s66
    %p75 = scmp.eq.s32.totalorder %s20, 7
    %p76 = por %p74, %p75
    %p77 = scmp.ne.s32.totalorder %s66, %s67
    %p78 = scmp.eq.s32.totalorder %s20, 0
    %p79 = por %p77, %p78
    %p80 = scmp.ne.s32.totalorder %s66, %s67
    %p81 = scmp.eq.s32.totalorder %s21, 7
    %p82 = por %p80, %p81
    %p84 = scmp.ne.s32.totalorder %s67, %s83
    %p85 = scmp.eq.s32.totalorder %s21, 0
    %p86 = por %p84, %p85
    %s87 = ssub.s32 %s23, %s30
    %p88 = scmp.eq.s32.totalorder %s87, 0
    %s90 = sadd.s32 %s89, 1
    %s91 = scalar_select %p88, %s89, %s90
    %p94 = pneg %p88
    %p95 = scmp.eq.s32.totalorder %s15, 7
    %p96 = por %p94, %p95
    %p97 = scmp.ne.s32.totalorder %s89, %s92
    %p98 = scmp.eq.s32.totalorder %s15, 0
    %p99 = por %p97, %p98
    %p100 = scmp.ne.s32.totalorder %s89, %s92
    %p101 = scmp.eq.s32.totalorder %s20, 7
    %p102 = por %p100, %p101
    %p103 = scmp.ne.s32.totalorder %s92, %s93
    %p104 = scmp.eq.s32.totalorder %s20, 0
    %p105 = por %p103, %p104
    %p106 = scmp.ne.s32.totalorder %s92, %s93
    %p107 = scmp.eq.s32.totalorder %s21, 7
    %p108 = por %p106, %p107
    %p110 = scmp.ne.s32.totalorder %s93, %s109
    %p111 = scmp.eq.s32.totalorder %s21, 0
    %p112 = por %p110, %p111
    %s113 = ssub.s32 %s23, %s30
    %p114 = scmp.eq.s32.totalorder %s113, 0
    %s116 = sadd.s32 %s115, 1
    %s117 = scalar_select %p114, %s115, %s116
    %p120 = pneg %p114
    %p121 = scmp.eq.s32.totalorder %s15, 7
    %p122 = por %p120, %p121
    %p123 = scmp.ne.s32.totalorder %s115, %s118
    %p124 = scmp.eq.s32.totalorder %s15, 0
    %p125 = por %p123, %p124
    %p126 = scmp.ne.s32.totalorder %s115, %s118
    %p127 = scmp.eq.s32.totalorder %s20, 7
    %p128 = por %p126, %p127
    %p129 = scmp.ne.s32.totalorder %s118, %s119
    %p130 = scmp.eq.s32.totalorder %s20, 0
    %p131 = por %p129, %p130
    %p132 = scmp.ne.s32.totalorder %s118, %s119
    %p133 = scmp.eq.s32.totalorder %s21, 7
    %p134 = por %p132, %p133
    %p136 = scmp.ne.s32.totalorder %s119, %s135
    %p137 = scmp.eq.s32.totalorder %s21, 0
    %p138 = por %p136, %p137
    %s140 = sadd.s32 %s139, 1
    %p143 = scmp.eq.s32.totalorder %s15, 7
    %p144 = scmp.ne.s32.totalorder %s139, %s141
    %p145 = scmp.eq.s32.totalorder %s15, 0
    %p146 = por %p144, %p145
    %p147 = scmp.ne.s32.totalorder %s139, %s141
    %p148 = scmp.eq.s32.totalorder %s20, 7
    %p149 = por %p147, %p148
    %p150 = scmp.ne.s32.totalorder %s141, %s142
    %p151 = scmp.eq.s32.totalorder %s20, 0
    %p152 = por %p150, %p151
    %p153 = scmp.ne.s32.totalorder %s141, %s142
    %p154 = scmp.eq.s32.totalorder %s21, 7
    %p155 = por %p153, %p154
    %p157 = scmp.ne.s32.totalorder %s142, %s156
    %p158 = scmp.eq.s32.totalorder %s21, 0
    %p159 = por %p157, %p158
    %s161 = sadd.s32 %s160, 1
    %p164 = scmp.eq.s32.totalorder %s15, 7
    %p165 = scmp.ne.s32.totalorder %s160, %s162
    %p166 = scmp.eq.s32.totalorder %s15, 0
    %p167 = por %p165, %p166
    %p168 = scmp.ne.s32.totalorder %s160, %s162
    %p169 = scmp.eq.s32.totalorder %s20, 7
    %p170 = por %p168, %p169
    %p171 = scmp.ne.s32.totalorder %s162, %s163
    %p172 = scmp.eq.s32.totalorder %s20, 0
    %p173 = por %p171, %p172
    %p174 = scmp.ne.s32.totalorder %s162, %s163
    %p175 = scmp.eq.s32.totalorder %s21, 7
    %p176 = por %p174, %p175
    %p178 = scmp.ne.s32.totalorder %s163, %s177
    %p179 = scmp.eq.s32.totalorder %s21, 0
    %p180 = por %p178, %p179
    %s182 = sadd.s32 %s181, 1
    %p185 = scmp.eq.s32.totalorder %s15, 7
    %p186 = scmp.ne.s32.totalorder %s181, %s183
    %p187 = scmp.eq.s32.totalorder %s15, 0
    %p188 = por %p186, %p187
    %p189 = scmp.ne.s32.totalorder %s181, %s183
    %p190 = scmp.eq.s32.totalorder %s20, 7
    %p191 = por %p189, %p190
    %p192 = scmp.ne.s32.totalorder %s183, %s184
    %p193 = scmp.eq.s32.totalorder %s20, 0
    %p194 = por %p192, %p193
    %p195 = scmp.ne.s32.totalorder %s183, %s184
    %p196 = scmp.eq.s32.totalorder %s21, 7
    %p197 = por %p195, %p196
    %p199 = scmp.ne.s32.totalorder %s184, %s198
    %p200 = scmp.eq.s32.totalorder %s21, 0
    %p201 = por %p199, %p200
    %s203 = sadd.s32 %s202, 1
    %p206 = scmp.eq.s32.totalorder %s15, 7
    %p207 = scmp.ne.s32.totalorder %s202, %s204
    %p208 = scmp.eq.s32.totalorder %s15, 0
    %p209 = por %p207, %p208
    %p210 = scmp.ne.s32.totalorder %s202, %s204
    %p211 = scmp.eq.s32.totalorder %s20, 7
    %p212 = por %p210, %p211
    %p213 = scmp.ne.s32.totalorder %s204, %s205
    %p214 = scmp.eq.s32.totalorder %s20, 0
    %p215 = por %p213, %p214
    %p216 = scmp.ne.s32.totalorder %s204, %s205
    %p217 = scmp.eq.s32.totalorder %s21, 7
    %p218 = por %p216, %p217
    %p220 = scmp.ne.s32.totalorder %s205, %s219
    %p221 = scmp.eq.s32.totalorder %s21, 0
    %p222 = por %p220, %p221
    %s224 = sadd.s32 %s223, 1
    %p227 = scmp.eq.s32.totalorder %s15, 7
    %p228 = scmp.ne.s32.totalorder %s223, %s225
    %p229 = scmp.eq.s32.totalorder %s15, 0
    %p230 = por %p228, %p229
    %p231 = scmp.ne.s32.totalorder %s223, %s225
    %p232 = scmp.eq.s32.totalorder %s20, 7
    %p233 = por %p231, %p232
    %p234 = scmp.ne.s32.totalorder %s225, %s226
    %p235 = scmp.eq.s32.totalorder %s20, 0
    %p236 = por %p234, %p235
    %p237 = scmp.ne.s32.totalorder %s225, %s226
    %p238 = scmp.eq.s32.totalorder %s21, 7
    %p239 = por %p237, %p238
    %p241 = scmp.ne.s32.totalorder %s226, %s240
    %p242 = scmp.eq.s32.totalorder %s21, 0
    %p243 = por %p241, %p242
    %s244 = ssub.s32 %s22, %s34
    %p245 = scmp.eq.s32.totalorder %s244, 0
    %s247 = sadd.s32 %s246, 1
    %s248 = scalar_select %p245, %s246, %s247
    %p251 = pneg %p245
    %p252 = scmp.eq.s32.totalorder %s15, 7
    %p253 = por %p251, %p252
    %p254 = scmp.ne.s32.totalorder %s246, %s249
    %p255 = scmp.eq.s32.totalorder %s15, 0
    %p256 = por %p254, %p255
    %p257 = scmp.ne.s32.totalorder %s246, %s249
    %p258 = scmp.eq.s32.totalorder %s20, 7
    %p259 = por %p257, %p258
    %p260 = scmp.ne.s32.totalorder %s249, %s250
    %p261 = scmp.eq.s32.totalorder %s20, 0
    %p262 = por %p260, %p261
    %p263 = scmp.ne.s32.totalorder %s249, %s250
    %p264 = scmp.eq.s32.totalorder %s21, 7
    %p265 = por %p263, %p264
    %p267 = scmp.ne.s32.totalorder %s250, %s266
    %p268 = scmp.eq.s32.totalorder %s21, 0
    %p269 = por %p267, %p268
    %p270 = scmp.le.s32.totalorder 1, %s15
    %p271 = scmp.lt.s32.totalorder %s15, 9
    %p272 = pnand %p270, %p271
    %p273 = pneg %p272
    // Predicated region
    $region9: #{transformer_decoder_block.2} parent=5 // pred_check
      _
    $region10: #{transformer_decoder_block.2} parent=5 // pred_check_branch
      %275 = sbr.rel (%p272) target = $region12
    $region11: #{transformer_decoder_block.2} parent=5 // pred_region
      %s276 = ssub.s32 %s15, 1
      // Predicated region
      $region13: #{transformer_decoder_block.2} parent=11 // pred_check
        %p277 = pneg %p152
      $region14: #{transformer_decoder_block.2} parent=11 // pred_check_branch
        %279 = sbr.rel (%p277) target = $region16
      $region15: #{transformer_decoder_block.2} parent=11 // pred_region
        _
      $region16: #{transformer_decoder_block.2} parent=11 // pred_fallthru
        _
      // Predicated region
      $region17: #{transformer_decoder_block.2} parent=11 // pred_check
        %p280 = pneg %p173
      $region18: #{transformer_decoder_block.2} parent=11 // pred_check_branch
        %282 = sbr.rel (%p280) target = $region20
      $region19: #{transformer_decoder_block.2} parent=11 // pred_region
        _
      $region20: #{transformer_decoder_block.2} parent=11 // pred_fallthru
        _
      // Predicated region
      $region21: #{transformer_decoder_block.2} parent=11 // pred_check
        %p283 = pneg %p194
      $region22: #{transformer_decoder_block.2} parent=11 // pred_check_branch
        %285 = sbr.rel (%p283) target = $region24
      $region23: #{transformer_decoder_block.2} parent=11 // pred_region
        _
      $region24: #{transformer_decoder_block.2} parent=11 // pred_fallthru
        _
      // Predicated region
      $region25: #{transformer_decoder_block.2} parent=11 // pred_check
        %p286 = pneg %p215
      $region26: #{transformer_decoder_block.2} parent=11 // pred_check_branch
        %288 = sbr.rel (%p286) target = $region28
      $region27: #{transformer_decoder_block.2} parent=11 // pred_region
        _
      $region28: #{transformer_decoder_block.2} parent=11 // pred_fallthru
        _
      // Predicated region
      $region29: #{transformer_decoder_block.2} parent=11 // pred_check
        %p289 = pneg %p236
      $region30: #{transformer_decoder_block.2} parent=11 // pred_check_branch
        %291 = sbr.rel (%p289) target = $region32
      $region31: #{transformer_decoder_block.2} parent=11 // pred_region
        _
      $region32: #{transformer_decoder_block.2} parent=11 // pred_fallthru
        _
    $region12: #{transformer_decoder_block.2} parent=5 // pred_fallthru
      _
    %p292 = scmp.lt.s32.totalorder %s15, 8
    // Predicated region
    $region33: #{transformer_decoder_block.2} parent=5 // pred_check
      %p293 = pneg %p292
    $region34: #{transformer_decoder_block.2} parent=5 // pred_check_branch
      %295 = sbr.rel (%p293) target = $region36
    $region35: #{transformer_decoder_block.2} parent=5 // pred_region
      // Predicated region
      $region37: #{transformer_decoder_block.2} parent=35 // pred_check
        %p296 = pneg %p47
      $region38: #{transformer_decoder_block.2} parent=35 // pred_check_branch
        %298 = sbr.rel (%p296) target = $region40
      $region39: #{transformer_decoder_block.2} parent=35 // pred_region
        %p299 = scmp.lt.s32.totalorder %s22, 1
        %s300 = scalar_select %p299, %s22, 1
        %s301 = smul.addr %s300, 2
        %s302 = smul.addr %s301, 8
        %s303 = scalar_lea.vmem %s0, %s302
      $region40: #{transformer_decoder_block.2} parent=35 // pred_fallthru
        _
      // Predicated region
      $region41: #{transformer_decoder_block.2} parent=35 // pred_check
        %p304 = pneg %p73
      $region42: #{transformer_decoder_block.2} parent=35 // pred_check_branch
        %306 = sbr.rel (%p304) target = $region44
      $region43: #{transformer_decoder_block.2} parent=35 // pred_region
        %p307 = scmp.lt.s32.totalorder %s23, 3
        %s308 = scalar_select %p307, %s23, 3
        %s309 = smul.addr %s308, 16
        %s310 = smul.addr %s309, 8
        %s311 = scalar_lea.vmem %s1, %s310
      $region44: #{transformer_decoder_block.2} parent=35 // pred_fallthru
        _
      // Predicated region
      $region45: #{transformer_decoder_block.2} parent=35 // pred_check
        %p312 = pneg %p99
      $region46: #{transformer_decoder_block.2} parent=35 // pred_check_branch
        %314 = sbr.rel (%p312) target = $region48
      $region47: #{transformer_decoder_block.2} parent=35 // pred_region
        %p315 = scmp.lt.s32.totalorder %s23, 3
        %s316 = scalar_select %p315, %s23, 3
        %s317 = smul.addr %s316, 16
        %s318 = smul.addr %s317, 8
        %s319 = scalar_lea.vmem %s2, %s318
      $region48: #{transformer_decoder_block.2} parent=35 // pred_fallthru
        _
      // Predicated region
      $region49: #{transformer_decoder_block.2} parent=35 // pred_check
        %p320 = pneg %p125
      $region50: #{transformer_decoder_block.2} parent=35 // pred_check_branch
        %322 = sbr.rel (%p320) target = $region52
      $region51: #{transformer_decoder_block.2} parent=35 // pred_region
        %s323 = smul.u32 4, %s23
        %p324 = scmp.lt.s32.totalorder %s323, 15
        %s325 = scalar_select %p324, %s323, 15
        %s326 = smul.addr %s325, 8
        %s327 = scalar_lea.vmem %s3, %s326
        %s328 = smul.u32 4, %s23
      $region52: #{transformer_decoder_block.2} parent=35 // pred_fallthru
        _
    $region36: #{transformer_decoder_block.2} parent=5 // pred_fallthru
      _
    %p329 = scmp.le.s32.totalorder 1, %s15
    %p330 = scmp.lt.s32.totalorder %s15, 9
    %p331 = pnand %p329, %p330
    %p332 = pneg %p331
    // Predicated region
    $region53: #{transformer_decoder_block.2} parent=5 // pred_check
      _
    $region54: #{transformer_decoder_block.2} parent=5 // pred_check_branch
      %334 = sbr.rel (%p331) target = $region56
    $region55: #{transformer_decoder_block.2} parent=5 // pred_region
      %s335 = ssub.s32 %s15, 1
      %p336 = scmp.lt.s32.totalorder %s24, 1
      %s337 = scalar_select %p336, %s24, 1
      %s338 = smul.addr %s337, 2
      %s339 = smul.addr %s338, 8
      %s340 = scalar_lea.vmem %s0, %s339
      %p341 = pneg %p53
      %p342 = pneg %p50
      %p343 = scmp.lt.s32.totalorder %s25, 3
      %s344 = scalar_select %p343, %s25, 3
      %s345 = smul.addr %s344, 16
      %s346 = smul.addr %s345, 8
      %s347 = scalar_lea.vmem %s1, %s346
      %p348 = pneg %p79
      %p349 = pneg %p76
      %p350 = scmp.lt.s32.totalorder %s25, 3
      %s351 = scalar_select %p350, %s25, 3
      %s352 = smul.addr %s351, 16
      %s353 = smul.addr %s352, 8
      %s354 = scalar_lea.vmem %s2, %s353
      %p355 = pneg %p105
      %p356 = pneg %p102
      %s357 = smul.u32 4, %s25
      %p358 = scmp.lt.s32.totalorder %s357, 15
      %s359 = scalar_select %p358, %s357, 15
      %s360 = smul.addr %s359, 8
      %s361 = scalar_lea.vmem %s3, %s360
      %p362 = pneg %p131
      %p363 = pneg %p128
      %p364 = pneg %p152
      %p365 = pneg %p149
      %p366 = pneg %p173
      %p367 = pneg %p170
      %p368 = pneg %p194
      %p369 = pneg %p191
      %p370 = pneg %p215
      %p371 = pneg %p212
      %p372 = pneg %p236
      %p373 = pneg %p233
      %p374 = pneg %p262
      %p375 = pneg %p259
      %p376 = scmp.lt.s32.totalorder %s24, 1
      %s377 = scalar_select %p376, %s24, 1
      %s378 = smul.addr %s377, 2
      %s379 = smul.addr %s378, 8
      %s380 = scalar_lea.vmem %s9, %s379
      %p381 = scmp.lt.s32.totalorder %s24, 1
      %s382 = scalar_select %p381, %s24, 1
      %s383 = smul.addr %s382, 2
      %s384 = smul.addr %s383, 8
      %s385 = scalar_lea.vmem %s0, %s384
      %p386 = scmp.lt.s32.totalorder %s25, 3
      %s387 = scalar_select %p386, %s25, 3
      %s388 = smul.addr %s387, 16
      %s389 = smul.addr %s388, 8
      %s390 = scalar_lea.vmem %s1, %s389
      %p391 = scmp.lt.s32.totalorder %s25, 3
      %s392 = scalar_select %p391, %s25, 3
      %s393 = smul.addr %s392, 16
      %s394 = smul.addr %s393, 8
      %s395 = scalar_lea.vmem %s2, %s394
      %s396 = smul.u32 4, %s25
      %p397 = scmp.lt.s32.totalorder %s396, 15
      %s398 = scalar_select %p397, %s396, 15
      %s399 = smul.addr %s398, 8
      %s400 = scalar_lea.vmem %s3, %s399
      %s401 = smul.u32 4, %s25
      %p402 = scmp.lt.s32.totalorder %s24, 1
      %s403 = scalar_select %p402, %s24, 1
      %s404 = smul.addr %s403, 2
      %s405 = smul.addr %s404, 8
      %s406 = scalar_lea.vmem %s9, %s405
      %p407 = scmp.eq.s32.totalorder %s25, 0
      // Predicated region
      $region57: #{transformer_decoder_block.2} parent=55 // pred_check
        %p408 = pneg %p407
      $region58: #{transformer_decoder_block.2} parent=55 // pred_check_branch
        %410 = sbr.rel (%p408) target = $region60
      $region59: #{transformer_decoder_block.2} parent=55 // pred_region
        %411 = vst [vmem:[#allocation2] sm:$0xff] 0.0
        %412 = vst [vmem:[#allocation2 + $0x8] sm:$0xff] 0.0
      $region60: #{transformer_decoder_block.2} parent=55 // pred_fallthru
        _
      %v413 = vld [vmem:[%s385] sm:$0xff]
      %v414 = vld [vmem:[%s385 + $0x8] sm:$0xff]
      %v415 = vld [vmem:[%s390] sm:$0xff]
      %v416 = vld [vmem:[%s390 + $0x8] sm:$0xff]
      %v417 = vld [vmem:[%s390 + $0x10] sm:$0xff]
      %v418 = vld [vmem:[%s390 + $0x18] sm:$0xff]
      %v419 = vld [vmem:[%s390 + $0x20] sm:$0xff]
      %v420 = vld [vmem:[%s390 + $0x28] sm:$0xff]
      %v421 = vld [vmem:[%s390 + $0x30] sm:$0xff]
      %v422 = vld [vmem:[%s390 + $0x38] sm:$0xff]
      %v423 = vld [vmem:[%s390 + $0x40] sm:$0xff]
      %v424 = vld [vmem:[%s390 + $0x48] sm:$0xff]
      %v425 = vld [vmem:[%s390 + $0x50] sm:$0xff]
      %v426 = vld [vmem:[%s390 + $0x58] sm:$0xff]
      %v427 = vld [vmem:[%s390 + $0x60] sm:$0xff]
      %v428 = vld [vmem:[%s390 + $0x68] sm:$0xff]
      %v429 = vld [vmem:[%s390 + $0x70] sm:$0xff]
      %v430 = vld [vmem:[%s390 + $0x78] sm:$0xff]
      %431 = vmatpush.msra.mxu0 %v430
      %432 = vmatpush.msra.mxu0 %v429
      %433 = vmatpush.msra.mxu0 %v428
      %434 = vmatpush.msra.mxu0 %v427
      %435 = vmatpush.msra.mxu0 %v426
      %436 = vmatpush.msra.mxu0 %v425
      %437 = vmatpush.msra.mxu0 %v424
      %438 = vmatpush.msra.mxu0 %v423
      %439 = vmatpush.msra.mxu0 %v422
      %440 = vmatpush.msra.mxu0 %v421
      %441 = vmatpush.msra.mxu0 %v420
      %442 = vmatpush.msra.mxu0 %v419
      %443 = vmatpush.msra.mxu0 %v418
      %444 = vmatpush.msra.mxu0 %v417
      %445 = vmatpush.msra.mxu0 %v416
      %446 = vmatpush.msra.mxu0 %v415
      %447 = vmatmul.f32.gmra.mxu0 %v413
      %v448 = vpop.f32.mrf.mxu0
      %v449 = vadd.f32 0.0, %v448
      %450 = vmatmul.f32.gmra.mxu0 %v414
      %v451 = vpop.f32.mrf.mxu0
      %v452 = vadd.f32 0.0, %v451
      %453 = vdwg.mxu0
      %v454 = vld [vmem:[%s395] sm:$0xff]
      %v455 = vld [vmem:[%s395 + $0x8] sm:$0xff]
      %v456 = vld [vmem:[%s395 + $0x10] sm:$0xff]
      %v457 = vld [vmem:[%s395 + $0x18] sm:$0xff]
      %v458 = vld [vmem:[%s395 + $0x20] sm:$0xff]
      %v459 = vld [vmem:[%s395 + $0x28] sm:$0xff]
      %v460 = vld [vmem:[%s395 + $0x30] sm:$0xff]
      %v461 = vld [vmem:[%s395 + $0x38] sm:$0xff]
      %v462 = vld [vmem:[%s395 + $0x40] sm:$0xff]
      %v463 = vld [vmem:[%s395 + $0x48] sm:$0xff]
      %v464 = vld [vmem:[%s395 + $0x50] sm:$0xff]
      %v465 = vld [vmem:[%s395 + $0x58] sm:$0xff]
      %v466 = vld [vmem:[%s395 + $0x60] sm:$0xff]
      %v467 = vld [vmem:[%s395 + $0x68] sm:$0xff]
      %v468 = vld [vmem:[%s395 + $0x70] sm:$0xff]
      %v469 = vld [vmem:[%s395 + $0x78] sm:$0xff]
      %470 = vmatpush.msra.mxu0 %v469
      %471 = vmatpush.msra.mxu0 %v468
      %472 = vmatpush.msra.mxu0 %v467
      %473 = vmatpush.msra.mxu0 %v466
      %474 = vmatpush.msra.mxu0 %v465
      %475 = vmatpush.msra.mxu0 %v464
      %476 = vmatpush.msra.mxu0 %v463
      %477 = vmatpush.msra.mxu0 %v462
      %478 = vmatpush.msra.mxu0 %v461
      %479 = vmatpush.msra.mxu0 %v460
      %480 = vmatpush.msra.mxu0 %v459
      %481 = vmatpush.msra.mxu0 %v458
      %482 = vmatpush.msra.mxu0 %v457
      %483 = vmatpush.msra.mxu0 %v456
      %484 = vmatpush.msra.mxu0 %v455
      %485 = vmatpush.msra.mxu0 %v454
      %486 = vmatmul.f32.gmra.mxu0 %v413
      %v487 = vpop.f32.mrf.mxu0
      %v488 = vadd.f32 0.0, %v487
      %489 = vmatmul.f32.gmra.mxu0 %v414
      %v490 = vpop.f32.mrf.mxu0
      %v491 = vadd.f32 0.0, %v490
      %492 = vdwg.mxu0
      %v493 = vmul.f32 %v449, 0.17677669
      %v494 = vmul.f32 %v452, 0.17677669
      %vm495 = vcmask 261120
      %v497 = vsel %vm495, %v493, 0
      %v500 = vsel %vm495, %v494, 0
      %v503 = vsel %vm495, %v449, 0
      %v506 = vsel %vm495, %v452, 0
      %508 = vmatpush.xpose.msra.mxu0 0.0
      %509 = vmatpush.xpose.msra.mxu0 0.0
      %510 = vmatpush.xpose.msra.mxu0 0.0
      %511 = vmatpush.xpose.msra.mxu0 0.0
      %512 = vmatpush.xpose.msra.mxu0 0.0
      %513 = vmatpush.xpose.msra.mxu0 0.0
      %514 = vmatpush.xpose.msra.mxu0 0.0
      %515 = vmatpush.xpose.msra.mxu0 0.0
      %516 = vmatpush.xpose.msra.mxu0 0.0
      %517 = vmatpush.xpose.msra.mxu0 0.0
      %518 = vmatpush.xpose.msra.mxu0 0.0
      %519 = vmatpush.xpose.msra.mxu0 0.0
      %520 = vmatpush.xpose.msra.mxu0 0.0
      %521 = vmatpush.xpose.msra.mxu0 0.0
      %522 = vmatpush.xpose.msra.mxu0 %v506
      %523 = vmatpush.xpose.msra.mxu0 %v503
      %524 = vmatmul.f32.gmra.mxu0 %v497
      %v525 = vpop.f32.mrf.mxu0
      %v526 = vadd.f32 0.0, %v525
      %527 = vmatmul.f32.gmra.mxu0 %v500
      %v528 = vpop.f32.mrf.mxu0
      %v529 = vadd.f32 0.0, %v528
      %530 = vdwg.mxu0
      %vm531 = vcmask 130048
      %v532 = vsel %vm531, %v526, -inf
      %533 = vmax.xlane.f32.xlu0 %v532
      %v534 = vpop.xlane.xlu0 %533
      %v535 = vsel %vm531, %v529, -inf
      %536 = vmax.xlane.f32.xlu0 %v535
      %v537 = vpop.xlane.xlu0 %536
      %v538 = vsub.f32 %v526, %v534
      %v539 = vsub.f32 %v529, %v537
      %v540 = vmul.f32 %v538, 1.442695
      %v541 = vpow.pop %v540
      %v542 = vmul.f32 %v539, 1.442695
      %v543 = vpow.pop %v542
      %v544 = vsel %vm531, %v541, 0.0
      %545 = vadd.xlane.f32.xlu0 %v544
      %v546 = vpop.xlane.xlu0 %545
      %v547 = vsel %vm531, %v543, 0.0
      %548 = vadd.xlane.f32.xlu0 %v547
      %v549 = vpop.xlane.xlu0 %548
      %v550 = vrcp.pop %v546
      %v551 = vmul.f32 %v546, %v550
      %v552 = vsub.f32 1.0, %v551
      %v553 = vmul.f32 %v550, %v552
      %v554 = vadd.f32 %v550, %v553
      %vm555 = vweird.f32 %v546
      %vm556 = vweird.f32 %v550
      %vm557 = vmor %vm555, %vm556
      %v558 = vsel %vm557, %v550, %v554
      %v559 = vand.u32 2147483647, %v546
      %vm560 = vcmp.eq.f32.partialorder %v559, 8.507059e+37
      %v561 = vand.u32 %v546, 2147483648
      %v562 = vor.u32 1.1754944e-38, %v561
      %v563 = vsel %vm560, %v562, %v558
      %v564 = vmul.f32 %v541, %v563
      %v565 = vrcp.pop %v549
      %v566 = vmul.f32 %v549, %v565
      %v567 = vsub.f32 1.0, %v566
      %v568 = vmul.f32 %v565, %v567
      %v569 = vadd.f32 %v565, %v568
      %vm570 = vweird.f32 %v549
      %vm571 = vweird.f32 %v565
      %vm572 = vmor %vm570, %vm571
      %v573 = vsel %vm572, %v565, %v569
      %v574 = vand.u32 2147483647, %v549
      %vm575 = vcmp.eq.f32.partialorder %v574, 8.507059e+37
      %v576 = vand.u32 %v549, 2147483648
      %v577 = vor.u32 1.1754944e-38, %v576
      %v578 = vsel %vm575, %v577, %v573
      %v579 = vmul.f32 %v543, %v578
      %v581 = vsel %vm531, %v564, 0
      %v584 = vsel %vm531, %v579, 0
      %586 = vmatpush.msra.mxu0 0.0
      %587 = vmatpush.msra.mxu0 0.0
      %588 = vmatpush.msra.mxu0 0.0
      %589 = vmatpush.msra.mxu0 0.0
      %590 = vmatpush.msra.mxu0 0.0
      %591 = vmatpush.msra.mxu0 0.0
      %592 = vmatpush.msra.mxu0 0.0
      %593 = vmatpush.msra.mxu0 0.0
      %594 = vmatpush.msra.mxu0 0.0
      %595 = vmatpush.msra.mxu0 0.0
      %596 = vmatpush.msra.mxu0 0.0
      %597 = vmatpush.msra.mxu0 0.0
      %598 = vmatpush.msra.mxu0 0.0
      %599 = vmatpush.msra.mxu0 0.0
      %600 = vmatpush.msra.mxu0 %v491
      %601 = vmatpush.msra.mxu0 %v488
      %602 = vmatmul.f32.gmra.mxu0 %v581
      %v603 = vpop.f32.mrf.mxu0
      %v604 = vadd.f32 0.0, %v603
      %605 = vmatmul.f32.gmra.mxu0 %v584
      %v606 = vpop.f32.mrf.mxu0
      %v607 = vadd.f32 0.0, %v606
      %608 = vdwg.mxu0
      %v609 = vld [vmem:[#allocation2] sm:$0xff]
      %v610 = vld [vmem:[#allocation2 + $0x8] sm:$0xff]
      %v611 = vld [vmem:[%s400] sm:$0xff]
      %v612 = vld [vmem:[%s400 + $0x8] sm:$0xff]
      %v613 = vld [vmem:[%s400 + $0x10] sm:$0xff]
      %v614 = vld [vmem:[%s400 + $0x18] sm:$0xff]
      %v616 = vsel %vm495, %v604, 0
      %v619 = vsel %vm495, %v607, 0
      %621 = vmatpush.msra.mxu0 0.0
      %622 = vmatpush.msra.mxu0 0.0
      %623 = vmatpush.msra.mxu0 0.0
      %624 = vmatpush.msra.mxu0 0.0
      %625 = vmatpush.msra.mxu0 0.0
      %626 = vmatpush.msra.mxu0 0.0
      %627 = vmatpush.msra.mxu0 0.0
      %628 = vmatpush.msra.mxu0 0.0
      %629 = vmatpush.msra.mxu0 0.0
      %630 = vmatpush.msra.mxu0 0.0
      %631 = vmatpush.msra.mxu0 0.0
      %632 = vmatpush.msra.mxu0 0.0
      %633 = vmatpush.msra.mxu0 %v614
      %634 = vmatpush.msra.mxu0 %v613
      %635 = vmatpush.msra.mxu0 %v612
      %636 = vmatpush.msra.mxu0 %v611
      %637 = vmatmul.f32.gmra.mxu0 %v616
      %v638 = vpop.f32.mrf.mxu0
      %v639 = vadd.f32 0.0, %v638
      %640 = vmatmul.f32.gmra.mxu0 %v619
      %v641 = vpop.f32.mrf.mxu0
      %v642 = vadd.f32 0.0, %v641
      %643 = vdwg.mxu0
      %v644 = vadd.f32 %v609, %v639
      %v645 = vadd.f32 %v610, %v642
      %646 = vst [vmem:[#allocation2] sm:$0xff] %v644
      %647 = vst [vmem:[#allocation2 + $0x8] sm:$0xff] %v645
      %p648 = scmp.eq.s32.totalorder %s25, 3
      // Predicated region
      $region61: #{transformer_decoder_block.2} parent=55 // pred_check
        %p649 = pneg %p648
      $region62: #{transformer_decoder_block.2} parent=55 // pred_check_branch
        %651 = sbr.rel (%p649) target = $region64
      $region63: #{transformer_decoder_block.2} parent=55 // pred_region
        %v652 = vld [vmem:[#allocation2] sm:$0xff]
        %v653 = vld [vmem:[#allocation2 + $0x8] sm:$0xff]
        %v654 = vld [vmem:[%s4] sm:$0x1]
        %v656 = vperm.slane %v654, 0
        %v658 = vadd.f32 %v652, %v656
        %v659 = vadd.f32 %v653, %v656
        %v660 = vld [vmem:[%s5] sm:$0x1]
        %v661 = vld [vmem:[%s6] sm:$0x1]
        %662 = vadd.xlane.f32.xlu0 %v413
        %v663 = vpop.xlane.xlu0 %662
        %664 = vadd.xlane.f32.xlu0 %v414
        %v665 = vpop.xlane.xlu0 %664
        %v666 = vrcp.pop 128.0
        %v667 = vmul.f32 128.0, %v666
        %v668 = vsub.f32 1.0, %v667
        %v669 = vmul.f32 %v666, %v668
        %v670 = vadd.f32 %v666, %v669
        %vm671 = vweird.f32 %v666
        %v672 = vsel %vm671, %v666, %v670
        %v673 = vmul.f32 %v663, %v672
        %v674 = vmul.f32 %v665, %v672
        %v675 = vsub.f32 %v413, %v673
        %v676 = vsub.f32 %v414, %v674
        %v677 = vmul.f32 %v675, %v675
        %v678 = vmul.f32 %v676, %v676
        %679 = vadd.xlane.f32.xlu0 %v677
        %v680 = vpop.xlane.xlu0 %679
        %681 = vadd.xlane.f32.xlu0 %v678
        %v682 = vpop.xlane.xlu0 %681
        %v683 = vmul.f32 %v680, %v672
        %v684 = vmul.f32 %v682, %v672
        %v685 = vadd.f32 %v683, 1e-05
        %v686 = vadd.f32 %v684, 1e-05
        %v687 = vrsqrt.pop %v685
        %v688 = vmul.f32 %v687, %v685
        %v689 = vmul.f32 %v688, %v687
        %v690 = vmul.f32 0.5, %v689
        %v691 = vsub.f32 1.5, %v690
        %v692 = vmul.f32 %v687, %v691
        %vm693 = vweird.f32 %v685
        %vm694 = vweird.f32 %v687
        %vm695 = vmor %vm693, %vm694
        %v696 = vsel %vm695, %v687, %v692
        %v697 = vrsqrt.pop %v686
        %v698 = vmul.f32 %v697, %v686
        %v699 = vmul.f32 %v698, %v697
        %v700 = vmul.f32 0.5, %v699
        %v701 = vsub.f32 1.5, %v700
        %v702 = vmul.f32 %v697, %v701
        %vm703 = vweird.f32 %v686
        %vm704 = vweird.f32 %v697
        %vm705 = vmor %vm703, %vm704
        %v706 = vsel %vm705, %v697, %v702
        %v707 = vmul.f32 %v675, %v696
        %v708 = vmul.f32 %v676, %v706
        %v710 = vperm.slane %v660, 0
        %v712 = vmul.f32 %v707, %v710
        %v713 = vmul.f32 %v708, %v710
        %v715 = vperm.slane %v661, 0
        %v717 = vadd.f32 %v712, %v715
        %v718 = vadd.f32 %v713, %v715
        %v719 = vadd.f32 %v717, %v658
        %v720 = vadd.f32 %v718, %v659
        %v721 = vld [vmem:[%s7] sm:$0x1]
        %v722 = vld [vmem:[%s8] sm:$0x1]
        %723 = vadd.xlane.f32.xlu0 %v719
        %v724 = vpop.xlane.xlu0 %723
        %725 = vadd.xlane.f32.xlu0 %v720
        %v726 = vpop.xlane.xlu0 %725
        %v727 = vmul.f32 %v724, %v672
        %v728 = vmul.f32 %v726, %v672
        %v729 = vsub.f32 %v719, %v727
        %v730 = vsub.f32 %v720, %v728
        %v731 = vmul.f32 %v729, %v729
        %v732 = vmul.f32 %v730, %v730
        %733 = vadd.xlane.f32.xlu0 %v731
        %v734 = vpop.xlane.xlu0 %733
        %735 = vadd.xlane.f32.xlu0 %v732
        %v736 = vpop.xlane.xlu0 %735
        %v737 = vmul.f32 %v734, %v672
        %v738 = vmul.f32 %v736, %v672
        %v739 = vadd.f32 %v737, 1e-05
        %v740 = vadd.f32 %v738, 1e-05
        %v741 = vrsqrt.pop %v739
        %v742 = vmul.f32 %v741, %v739
        %v743 = vmul.f32 %v742, %v741
        %v744 = vmul.f32 0.5, %v743
        %v745 = vsub.f32 1.5, %v744
        %v746 = vmul.f32 %v741, %v745
        %vm747 = vweird.f32 %v739
        %vm748 = vweird.f32 %v741
        %vm749 = vmor %vm747, %vm748
        %v750 = vsel %vm749, %v741, %v746
        %v751 = vrsqrt.pop %v740
        %v752 = vmul.f32 %v751, %v740
        %v753 = vmul.f32 %v752, %v751
        %v754 = vmul.f32 0.5, %v753
        %v755 = vsub.f32 1.5, %v754
        %v756 = vmul.f32 %v751, %v755
        %vm757 = vweird.f32 %v740
        %vm758 = vweird.f32 %v751
        %vm759 = vmor %vm757, %vm758
        %v760 = vsel %vm759, %v751, %v756
        %v761 = vmul.f32 %v729, %v750
        %v762 = vmul.f32 %v730, %v760
        %v764 = vperm.slane %v721, 0
        %v766 = vmul.f32 %v761, %v764
        %v767 = vmul.f32 %v762, %v764
        %v769 = vperm.slane %v722, 0
        %v771 = vadd.f32 %v766, %v769
        %v772 = vadd.f32 %v767, %v769
        %773 = vst [vmem:[%s406] sm:$0xff] %v771
        %774 = vst [vmem:[%s406 + $0x8] sm:$0xff] %v772
      $region64: #{transformer_decoder_block.2} parent=55 // pred_fallthru
        _
      %p775 = scmp.lt.s32.totalorder %s24, 1
      %s776 = scalar_select %p775, %s24, 1
      %s777 = smul.addr %s776, 2
      %s778 = smul.addr %s777, 8
      %s779 = scalar_lea.vmem %s9, %s778
      // Predicated region
      $region65: #{transformer_decoder_block.2} parent=55 // pred_check
        %p780 = pneg %p259
      $region66: #{transformer_decoder_block.2} parent=55 // pred_check_branch
        %782 = sbr.rel (%p780) target = $region68
      $region67: #{transformer_decoder_block.2} parent=55 // pred_region
        _
      $region68: #{transformer_decoder_block.2} parent=55 // pred_fallthru
        _
    $region56: #{transformer_decoder_block.2} parent=5 // pred_fallthru
      _
    %p783 = scmp.le.s32.totalorder 2, %s15
    // Predicated region
    $region69: #{transformer_decoder_block.2} parent=5 // pred_check
      %p784 = pneg %p783
    $region70: #{transformer_decoder_block.2} parent=5 // pred_check_branch
      %786 = sbr.rel (%p784) target = $region72
    $region71: #{transformer_decoder_block.2} parent=5 // pred_region
      %s787 = ssub.s32 %s15, 2
      // Predicated region
      $region73: #{transformer_decoder_block.2} parent=71 // pred_check
        %p788 = pneg %p265
      $region74: #{transformer_decoder_block.2} parent=71 // pred_check_branch
        %790 = sbr.rel (%p788) target = $region76
      $region75: #{transformer_decoder_block.2} parent=71 // pred_region
        %p791 = scmp.lt.s32.totalorder %s26, 1
        %s792 = scalar_select %p791, %s26, 1
        %s793 = smul.addr %s792, 2
        %s794 = smul.addr %s793, 8
        %s795 = scalar_lea.vmem %s9, %s794
      $region76: #{transformer_decoder_block.2} parent=71 // pred_fallthru
        _
    $region72: #{transformer_decoder_block.2} parent=5 // pred_fallthru
      _
  $region6: #{transformer_decoder_block.2} parent=0 // loop_footer
    %s19 = sadd.s32 1, %s15
  $region7: #{transformer_decoder_block.2} parent=0 // loop_footer_branch
    %14 = sbr.rel target = $region3
  $region8: #{transformer_decoder_block.2} parent=0 // loop_exit
    _

</llo_original>
